<compile_context>
chip_gen: v7x
topology: tpu7x:2x2x1
jax: 0.10.0
libtpu: 0.0.40
codegen_flags: <defaults>
</compile_context>

<pallas_src>
import functools

import numpy as np
import jax
import jax.numpy as jnp
from jax.experimental import pallas as pl
from jax.experimental.pallas import tpu as pltpu


def _round_up(x, m):
    return ((x + m - 1) // m) * m


def _vmem_capacity_bytes():
    """Physical VMEM per TensorCore; conservative (v7x) fallback if unknown."""
    try:
        info = pltpu.get_tpu_info()
        cap = getattr(info, "vmem_capacity_bytes", None)
        if cap:
            return int(cap)
    except Exception:
        pass
    return 64 * 1024 * 1024


def _pick_chunk(total, unit_bytes, budget, multiple=1):
    """Largest divisor of `total` that is a multiple of `multiple` and whose
    temporaries (chunk * unit_bytes) fit `budget`."""
    best = None
    c = multiple
    while c <= total:
        if total % c == 0 and c * unit_bytes <= budget:
            best = c
        c += multiple
    if best is None:
        best = multiple if total % multiple == 0 else 1
    return best


def _estimate_step_vmem(bt, n, k, dp, d_model, dmp, act_isz, w_isz, chunk_budget):
    """Rough per-grid-step VMEM bytes (double-buffered IO + weights + live set)."""
    m = bt * n
    io = 2 * (bt * n * dp * act_isz          # features block
              + bt * k * n * 4 * act_isz     # knn [xyz|w] slab block
              + bt * n * dp * 4              # res output block
              + bt * n * d_model * 4)        # attn output block
    weights = 2 * ((dp * 3 * dmp + 4 * dmp + dmp * (dmp + dp)) * w_isz
                   + 4 * 3 * dmp * 4)
    live = (m * 3 * dmp * 4                  # fused qkv
            + 6 * m * dmp * 4                # q/k/v, wavg accumulators
            + 3 * m * dmp * act_isz)         # q/k/v compute-dtype copies
    return io + weights + live + 2 * chunk_budget


def _pick_bt(b, n, k, dp, d_model, dmp, act_isz, w_isz, budget, chunk_budget):
    fits = [d for d in range(1, b + 1)
            if b % d == 0 and _estimate_step_vmem(d, n, k, dp, d_model, dmp,
                                                  act_isz, w_isz,
                                                  chunk_budget) <= budget]
    if not fits:
        return 1
    even = [d for d in fits if (b // d) % 2 == 0]   # keep both v7x TCs fed
    return max(even) if even else max(fits)


def transformer_block_kernel(bt, n, knb, kc, nq, d_model, dp, dmp, cdt,
                             feats_ref, knn_ref, wqkv_ref, d1w_ref, w2_ref,
                             bias_ref, res_ref, attn_ref, q_buf):
    f32 = jnp.float32
    m = bt * n

    b_qkv = bias_ref[0:1, 0:3 * dmp]
    b_d1 = bias_ref[1:2, 0:dmp]
    b_d2 = bias_ref[2:3, 0:dmp]
    b_fc2 = bias_ref[3:4, 0:dp]

    feats = feats_ref[...]                                   # (bt, n, dp), compute dtype
    f2 = feats.reshape(m, dp)

    # --- fused (fc1 ∘ {wq, wk, wv}) projection: one wide MXU matmul ---
    qkv = jnp.dot(f2, wqkv_ref[...], preferred_element_type=f32) + b_qkv
    q = qkv[:, 0:dmp]
    ky = qkv[:, dmp:2 * dmp]
    v = qkv[:, 2 * dmp:3 * dmp]

    # --- fc_delta positional MLP + distance-weighted neighbor average,
    #     tiled over neighbor chunks of size kc (live set O(m*kc*dmp)) ---
    d1w = d1w_ref[...]                                       # (4, dmp), 4th row = 0
    d2w = w2_ref[:, 0:dmp]                                   # (dmp, dmp)
    nc = knb // kc

    def pos_body(c, carry):
        num, den = carry
        c0 = pl.multiple_of(c * kc, kc)
        blk = knn_ref[pl.ds(c0, kc)]                         # (kc, bt, n, 4)
        flat = blk.reshape(kc * bt * n, 4)                   # [x, y, z, w] rows
        h = jnp.maximum(jnp.dot(flat, d1w, preferred_element_type=f32) + b_d1, 0.0)
        pe = jnp.dot(h.astype(cdt), d2w, preferred_element_type=f32) + b_d2
        w = flat[:, 3:4].astype(f32)                         # kNN weight column
        num = num + (pe * w).reshape(kc, bt, n, dmp).sum(axis=0).reshape(m, dmp)
        den = den + w.reshape(kc, bt, n, 1).sum(axis=0).reshape(m, 1)
        return num, den

    num0 = jnp.zeros((m, dmp), f32)
    den0 = jnp.zeros((m, 1), f32)
    num, den = jax.lax.fori_loop(0, nc, pos_body, (num0, den0))
    wavg = num * pl.reciprocal(den, approx=True)             # (m, dmp)

    # --- attention, tiled over query rows; 1/sqrt(d_model) folded into q ---
    scale = 1.0 / float(np.sqrt(d_model))
    q_buf[...] = ((q + wavg) * scale).reshape(bt, n, dmp).astype(cdt)
    k3 = (ky + wavg).reshape(bt, n, dmp).astype(cdt)
    v3 = (v + wavg).reshape(bt, n, dmp).astype(cdt)
    w_fc2 = w2_ref[:, dmp:dmp + dp]                          # (dmp, dp)
    nqc = n // nq

    def attn_body(qi, _):
        q0 = pl.multiple_of(qi * nq, nq)
        qb = q_buf[:, pl.ds(q0, nq), :]                      # (bt, nq, dmp)
        s = jnp.einsum('bqd,bkd->bqk', qb, k3, preferred_element_type=f32)
        e = jnp.exp(s - jnp.max(s, axis=-1, keepdims=True))
        p = e * pl.reciprocal(jnp.sum(e, axis=-1, keepdims=True))   # exact recip
        ab = jnp.einsum('bqk,bkd->bqd', p.astype(cdt), v3,
                        preferred_element_type=f32)          # (bt, nq, dmp) f32
        attn_ref[:, pl.ds(q0, nq), :] = ab[:, :, 0:d_model]
        fb = feats_ref[:, pl.ds(q0, nq), :].reshape(bt * nq, dp).astype(f32)
        rb = (jnp.dot(ab.reshape(bt * nq, dmp).astype(cdt), w_fc2,
                      preferred_element_type=f32) + b_fc2 + fb)
        res_ref[:, pl.ds(q0, nq), :] = rb.reshape(bt, nq, dp)
        return 0

    jax.lax.fori_loop(0, nqc, attn_body, 0)


def transformer_block(xyz, features, params, k, *, bt=None, kc=None, nq=None,
                      compute_dtype=jnp.bfloat16):
    B, N, _ = xyz.shape
    d_points = features.shape[-1]
    d_model = params["fc1_w"].shape[1]
    assert N % 8 == 0, "N must be a multiple of 8 (sublane tile)"
    DM = _round_up(d_model, 128)
    f32 = jnp.float32
    act_isz = jnp.dtype(compute_dtype).itemsize
    w_isz = act_isz

    # generation-aware sizing
    cap = _vmem_capacity_bytes()
    budget = int(cap * 0.75)
    vmem_limit = min(budget, 100 * 1024 * 1024)
    chunk_budget = max(2 * 1024 * 1024, budget // 16)

    if bt is None:
        bt = _pick_bt(B, N, k, d_points, d_model, DM, act_isz, w_isz,
                      budget, chunk_budget)
    assert B % bt == 0
    m = bt * N
    if kc is None:
        kc = _pick_chunk(k, 3 * m * DM * 4, chunk_budget, multiple=1)
    assert k % kc == 0
    if nq is None:
        nq = _pick_chunk(N, 3 * bt * N * 4, chunk_budget, multiple=8)
    assert N % nq == 0 and nq % 8 == 0

    # ---- glue: kNN selection + gathers (no clean Pallas equivalent) ----
    # TODO(synk): top_k/gather kNN stays in plain JAX; top_k == argsort[:, :, :k]
    # for distinct distances.
    diff = xyz[:, :, None, :] - xyz[:, None, :, :]
    dists = jnp.sum(diff * diff, axis=-1)                    # (B, N, N)
    neg_d, knn_idx = jax.lax.top_k(-dists, k)                # (B, N, k)
    knn_w = 1.0 / (-neg_d + 1e-6)
    knn_xyz = jax.vmap(lambda pts, idx: pts[idx])(xyz, knn_idx)   # (B, N, k, 3)

    # single neighbor-major [xyz | weight] slab (one DMA stream, lane-packed 4-wide)
    kx = jnp.transpose(knn_xyz, (2, 0, 1, 3))                # (k, B, N, 3)
    kw = jnp.transpose(knn_w, (2, 0, 1))[..., None]          # (k, B, N, 1)
    knn_slab = jnp.concatenate([kx, kw], axis=-1).astype(compute_dtype)  # (k,B,N,4)
    feats_in = features.astype(compute_dtype)                # (B, N, dp), true width

    # ---- weight prep: fold fc1 into q/k/v, pad d_model lanes to DM ----
    def pad2(a, r, c):
        return jnp.pad(a, ((0, r - a.shape[0]), (0, c - a.shape[1])))

    fc1_w = params["fc1_w"].astype(f32)
    fc1_b = params["fc1_b"].astype(f32)
    wq_f, wk_f, wv_f = (fc1_w @ params["wq"], fc1_w @ params["wk"], fc1_w @ params["wv"])
    bq, bk, bv = (fc1_b @ params["wq"], fc1_b @ params["wk"], fc1_b @ params["wv"])
    wqkv = jnp.concatenate([pad2(wq_f, d_points, DM),
                            pad2(wk_f, d_points, DM),
                            pad2(wv_f, d_points, DM)], axis=1)          # (dp, 3*DM)
    bqkv = jnp.concatenate([pad2(bq, 1, DM), pad2(bk, 1, DM), pad2(bv, 1, DM)], axis=1)

    d1w4 = pad2(params["d1_w"].astype(f32), 4, DM)            # (4, DM), row 3 zero
    w2 = jnp.concatenate([pad2(params["d2_w"].astype(f32), DM, DM),
                          pad2(params["fc2_w"].astype(f32), DM, d_points)],
                         axis=1)                              # (DM, DM + dp)
    BW = 3 * DM
    bias = jnp.concatenate([pad2(bqkv, 1, BW),
                            pad2(params["d1_b"].astype(f32), 1, BW),
                            pad2(params["d2_b"].astype(f32), 1, BW),
                            pad2(params["fc2_b"].astype(f32), 1, BW)],
                           axis=0)                            # (4, BW) f32

    wqkv = wqkv.astype(compute_dtype)
    d1w4 = d1w4.astype(compute_dtype)
    w2 = w2.astype(compute_dtype)

    kernel = functools.partial(transformer_block_kernel,
                               bt, N, k, kc, nq, d_model, d_points, DM,
                               compute_dtype)

    in_specs = [
        pl.BlockSpec((bt, N, d_points), lambda b: (b, 0, 0)),       # features
        pl.BlockSpec((k, bt, N, 4), lambda b: (0, b, 0, 0)),        # knn [xyz|w] slab
        pl.BlockSpec((d_points, 3 * DM), lambda b: (0, 0)),         # fused qkv weight
        pl.BlockSpec((4, DM), lambda b: (0, 0)),                    # fc_delta layer-1 weight
        pl.BlockSpec((DM, DM + d_points), lambda b: (0, 0)),        # [d2_w | fc2_w]
        pl.BlockSpec((4, BW), lambda b: (0, 0)),                    # bias slab
    ]
    out_specs = [
        pl.BlockSpec((bt, N, d_points), lambda b: (b, 0, 0)),       # res (true width)
        pl.BlockSpec((bt, N, d_model), lambda b: (b, 0, 0)),        # attn (true width)
    ]
    out_shape = [
        jax.ShapeDtypeStruct((B, N, d_points), jnp.float32),
        jax.ShapeDtypeStruct((B, N, d_model), jnp.float32),
    ]

    res, attn = pl.pallas_call(
        kernel,
        out_shape=out_shape,
        grid_spec=pltpu.PrefetchScalarGridSpec(
            num_scalar_prefetch=0,
            grid=(B // bt,),
            in_specs=in_specs,
            out_specs=out_specs,
            scratch_shapes=[pltpu.VMEM((bt, N, DM), compute_dtype)],  # scaled q
        ),
        compiler_params=pltpu.CompilerParams(
            dimension_semantics=("parallel",),
            vmem_limit_bytes=vmem_limit,
        ),
    )(feats_in, knn_slab, wqkv, d1w4, w2, bias)
    return res, attn


def reference_transformer_block(xyz, features, params, k):
    """Pure-JAX reference mirroring the PyTorch forward exactly."""
    diff = xyz[:, :, None, :] - xyz[:, None, :, :]
    dists = jnp.sum(diff * diff, axis=-1)
    knn_idx = jnp.argsort(dists, axis=-1)[:, :, :k]
    knn_xyz = jax.vmap(lambda pts, idx: pts[idx])(xyz, knn_idx)
    pre = features
    x = features @ params["fc1_w"] + params["fc1_b"]
    q = x @ params["wq"]
    key = x @ params["wk"]
    v = x @ params["wv"]
    h = jnp.maximum(knn_xyz @ params["d1_w"] + params["d1_b"], 0.0)
    pos_enc = h @ params["d2_w"] + params["d2_b"]
    w = 1.0 / (jnp.take_along_axis(dists, knn_idx, axis=2) + 1e-6)
    weighted_avg = jnp.sum(pos_enc * w[..., None], axis=2) / jnp.sum(w, axis=2, keepdims=True)
    d_model = params["fc1_w"].shape[1]
    score = jnp.einsum('bnd,bmd->bnm', q + weighted_avg, key + weighted_avg) / np.sqrt(d_model)
    p = jax.nn.softmax(score, axis=-1)
    attn = jnp.einsum('bnm,bmd->bnd', p, v + weighted_avg)
    res = attn @ params["fc2_w"] + params["fc2_b"] + pre
    return res, attn


def init_params(key, d_points, d_model):
    ks = jax.random.split(key, 10)
    s = 0.1
    return {
        "fc1_w": s * jax.random.normal(ks[0], (d_points, d_model), jnp.float32),
        "fc1_b": s * jax.random.normal(ks[1], (1, d_model), jnp.float32),
        "wq": s * jax.random.normal(ks[2], (d_model, d_model), jnp.float32),
        "wk": s * jax.random.normal(ks[3], (d_model, d_model), jnp.float32),
        "wv": s * jax.random.normal(ks[4], (d_model, d_model), jnp.float32),
        "d1_w": s * jax.random.normal(ks[5], (3, d_model), jnp.float32),
        "d1_b": s * jax.random.normal(ks[6], (1, d_model), jnp.float32),
        "d2_w": s * jax.random.normal(ks[7], (d_model, d_model), jnp.float32),
        "d2_b": s * jax.random.normal(ks[8], (1, d_model), jnp.float32),
        "fc2_w": s * jax.random.normal(ks[9], (d_model, d_points), jnp.float32),
        "fc2_b": jnp.zeros((1, d_points), jnp.float32),
    }
    # NOTE: fc_gamma from the PyTorch module is unused in forward(), so it is omitted.


if __name__ == "__main__":
    B, N, d_points, d_model, k = 4, 16, 4, 32, 8

    key = jax.random.PRNGKey(0)
    k_xyz, k_feat, k_par = jax.random.split(key, 3)
    xyz = jax.random.normal(k_xyz, (B, N, 3), jnp.float32)
    features = jax.random.normal(k_feat, (B, N, d_points), jnp.float32)
    params = init_params(k_par, d_points, d_model)

    res_exp, attn_exp = reference_transformer_block(xyz, features, params, k)

    # Default path: bf16 operand/activation DMA, f32 accumulation (MXU-native on
    # all of v5e/v6e/v7x) — looser tolerance vs the f32 reference.
    res, attn = transformer_block(xyz, features, params, k)
    res, attn = jax.block_until_ready((res, attn))
    np.testing.assert_allclose(np.asarray(res), np.asarray(res_exp), atol=5e-2, rtol=5e-2)
    np.testing.assert_allclose(np.asarray(attn), np.asarray(attn_exp), atol=5e-2, rtol=5e-2)

    # f32 parity path.
    res32, attn32 = transformer_block(xyz, features, params, k,
                                      compute_dtype=jnp.float32)
    res32, attn32 = jax.block_until_ready((res32, attn32))
    np.testing.assert_allclose(np.asarray(res32), np.asarray(res_exp), atol=5e-3, rtol=5e-3)
    np.testing.assert_allclose(np.asarray(attn32), np.asarray(attn_exp), atol=5e-3, rtol=5e-3)

    # Explicitly exercise the k-chunked fc_delta loop and the query-row-chunked
    # attention loop (the paths that matter at large N / k on v7x).
    res_c, attn_c = transformer_block(xyz, features, params, k, bt=1, kc=4, nq=8,
                                      compute_dtype=jnp.float32)
    res_c, attn_c = jax.block_until_ready((res_c, attn_c))
    np.testing.assert_allclose(np.asarray(res_c), np.asarray(res_exp), atol=5e-3, rtol=5e-3)
    np.testing.assert_allclose(np.asarray(attn_c), np.asarray(attn_exp), atol=5e-3, rtol=5e-3)

    print("KERNEL_OK")
</pallas_src>

<mosaic_0001>
module attributes {stable_mosaic.version = 11 : i64} {
  func.func @transformer_block_kernel(%arg0: i32, %arg1: memref<2x16x4xbf16, #tpu.memory_space<vmem>>, %arg2: memref<8x2x16x4xbf16, #tpu.memory_space<vmem>>, %arg3: memref<4x384xbf16, #tpu.memory_space<vmem>>, %arg4: memref<4x128xbf16, #tpu.memory_space<vmem>>, %arg5: memref<128x132xbf16, #tpu.memory_space<vmem>>, %arg6: memref<4x384xf32, #tpu.memory_space<vmem>>, %arg7: memref<2x16x4xf32, #tpu.memory_space<vmem>>, %arg8: memref<2x16x32xf32, #tpu.memory_space<vmem>>, %arg9: memref<2x16x128xbf16, #tpu.memory_space<vmem>>) attributes {dimension_semantics = [#tpu.dimension_semantics<parallel>], iteration_bounds = array<i64: 2>, scalar_prefetch = 0 : i64, scratch_operands = 1 : i64, tpu.core_type = #tpu.core_type<tc>, window_params = [{transform_indices = @transform_0, window_bounds = array<i64: 2, 16, 4>}, {transform_indices = @transform_1, window_bounds = array<i64: 8, 2, 16, 4>}, {pipeline_mode = #tpu.pipeline_mode<synchronous>, transform_indices = @transform_2, window_bounds = array<i64: 4, 384>}, {pipeline_mode = #tpu.pipeline_mode<synchronous>, transform_indices = @transform_3, window_bounds = array<i64: 4, 128>}, {pipeline_mode = #tpu.pipeline_mode<synchronous>, transform_indices = @transform_4, window_bounds = array<i64: 128, 132>}, {pipeline_mode = #tpu.pipeline_mode<synchronous>, transform_indices = @transform_5, window_bounds = array<i64: 4, 384>}, {transform_indices = @transform_6, window_bounds = array<i64: 2, 16, 4>}, {transform_indices = @transform_7, window_bounds = array<i64: 2, 16, 32>}]} {
    %c0 = arith.constant 0 : index
    %c0_0 = arith.constant 0 : index
    %0 = vector.load %arg6[%c0, %c0_0] : memref<4x384xf32, #tpu.memory_space<vmem>>, vector<1x384xf32>
    %c1 = arith.constant 1 : index
    %c0_1 = arith.constant 0 : index
    %1 = vector.load %arg6[%c1, %c0_1] : memref<4x384xf32, #tpu.memory_space<vmem>>, vector<1x128xf32>
    %c2 = arith.constant 2 : index
    %c0_2 = arith.constant 0 : index
    %2 = vector.load %arg6[%c2, %c0_2] : memref<4x384xf32, #tpu.memory_space<vmem>>, vector<1x128xf32>
    %c3 = arith.constant 3 : index
    %c0_3 = arith.constant 0 : index
    %3 = vector.load %arg6[%c3, %c0_3] : memref<4x384xf32, #tpu.memory_space<vmem>>, vector<1x4xf32>
    %c0_4 = arith.constant 0 : index
    %c0_5 = arith.constant 0 : index
    %c0_6 = arith.constant 0 : index
    %4 = vector.load %arg1[%c0_4, %c0_5, %c0_6] : memref<2x16x4xbf16, #tpu.memory_space<vmem>>, vector<2x16x4xbf16>
    %5 = vector.shape_cast %4 : vector<2x16x4xbf16> to vector<32x4xbf16>
    %c0_7 = arith.constant 0 : index
    %c0_8 = arith.constant 0 : index
    %6 = vector.load %arg3[%c0_7, %c0_8] : memref<4x384xbf16, #tpu.memory_space<vmem>>, vector<4x384xbf16>
    %cst = arith.constant dense<0.000000e+00> : vector<32x384xf32>
    %7 = tpu.matmul %5, %6, %cst {dimension_numbers = #tpu.dot_dimension_numbers<[1], [0], [0], [1], [0, 0, 1, 1], [], []>} : vector<32x4xbf16>, vector<4x384xbf16>, vector<32x384xf32> -> vector<32x384xf32>
    %8 = vector.broadcast %0 : vector<1x384xf32> to vector<32x384xf32>
    %9 = arith.addf %7, %8 : vector<32x384xf32>
    %10 = vector.extract_strided_slice %9 {offsets = [0, 0], sizes = [32, 128], strides = [1, 1]} : vector<32x384xf32> to vector<32x128xf32>
    %11 = vector.extract_strided_slice %9 {offsets = [0, 128], sizes = [32, 128], strides = [1, 1]} : vector<32x384xf32> to vector<32x128xf32>
    %12 = vector.extract_strided_slice %9 {offsets = [0, 256], sizes = [32, 128], strides = [1, 1]} : vector<32x384xf32> to vector<32x128xf32>
    %c0_9 = arith.constant 0 : index
    %c0_10 = arith.constant 0 : index
    %13 = vector.load %arg4[%c0_9, %c0_10] : memref<4x128xbf16, #tpu.memory_space<vmem>>, vector<4x128xbf16>
    %c0_11 = arith.constant 0 : index
    %c0_12 = arith.constant 0 : index
    %14 = vector.load %arg5[%c0_11, %c0_12] : memref<128x132xbf16, #tpu.memory_space<vmem>>, vector<128x128xbf16>
    %cst_13 = arith.constant 0.000000e+00 : f32
    %15 = vector.broadcast %cst_13 : f32 to vector<32x128xf32>
    %cst_14 = arith.constant 0.000000e+00 : f32
    %16 = vector.broadcast %cst_14 : f32 to vector<32x1xf32>
    %c0_i32 = arith.constant 0 : i32
    %c8_i32 = arith.constant 8 : i32
    %17 = arith.muli %c0_i32, %c8_i32 : i32
    %18 = tpu.assume_multiple %17, 8 : i32
    %19 = arith.index_cast %18 : i32 to index
    %c0_15 = arith.constant 0 : index
    %c0_16 = arith.constant 0 : index
    %c0_17 = arith.constant 0 : index
    %20 = vector.load %arg2[%19, %c0_15, %c0_16, %c0_17] : memref<8x2x16x4xbf16, #tpu.memory_space<vmem>>, vector<8x2x16x4xbf16>
    %21 = vector.shape_cast %20 : vector<8x2x16x4xbf16> to vector<256x4xbf16>
    %cst_18 = arith.constant dense<0.000000e+00> : vector<256x128xf32>
    %22 = tpu.matmul %21, %13, %cst_18 {dimension_numbers = #tpu.dot_dimension_numbers<[1], [0], [0], [1], [0, 0, 1, 1], [], []>} : vector<256x4xbf16>, vector<4x128xbf16>, vector<256x128xf32> -> vector<256x128xf32>
    %23 = vector.broadcast %1 : vector<1x128xf32> to vector<256x128xf32>
    %24 = arith.addf %22, %23 : vector<256x128xf32>
    %cst_19 = arith.constant 0.000000e+00 : f32
    %25 = vector.broadcast %cst_19 : f32 to vector<256x128xf32>
    %26 = arith.maximumf %24, %25 : vector<256x128xf32>
    %27 = arith.truncf %26 : vector<256x128xf32> to vector<256x128xbf16>
    %cst_20 = arith.constant dense<0.000000e+00> : vector<256x128xf32>
    %28 = tpu.matmul %27, %14, %cst_20 {dimension_numbers = #tpu.dot_dimension_numbers<[1], [0], [0], [1], [0, 0, 1, 1], [], []>} : vector<256x128xbf16>, vector<128x128xbf16>, vector<256x128xf32> -> vector<256x128xf32>
    %29 = vector.broadcast %2 : vector<1x128xf32> to vector<256x128xf32>
    %30 = arith.addf %28, %29 : vector<256x128xf32>
    %31 = vector.extract_strided_slice %21 {offsets = [0, 3], sizes = [256, 1], strides = [1, 1]} : vector<256x4xbf16> to vector<256x1xbf16>
    %32 = arith.extf %31 : vector<256x1xbf16> to vector<256x1xf32>
    %33 = vector.broadcast %32 : vector<256x1xf32> to vector<256x128xf32>
    %34 = arith.mulf %30, %33 : vector<256x128xf32>
    %35 = vector.shape_cast %34 : vector<256x128xf32> to vector<8x2x16x128xf32>
    %cst_21 = arith.constant dense<0.000000e+00> : vector<2x16x128xf32>
    %36 = vector.multi_reduction <add>, %35, %cst_21 [0] : vector<8x2x16x128xf32> to vector<2x16x128xf32>
    %37 = vector.shape_cast %36 : vector<2x16x128xf32> to vector<32x128xf32>
    %38 = arith.addf %15, %37 : vector<32x128xf32>
    %39 = vector.shape_cast %32 : vector<256x1xf32> to vector<8x2x16x1xf32>
    %cst_22 = arith.constant dense<0.000000e+00> : vector<2x16x1xf32>
    %40 = vector.multi_reduction <add>, %39, %cst_22 [0] : vector<8x2x16x1xf32> to vector<2x16x1xf32>
    %41 = vector.shape_cast %40 : vector<2x16x1xf32> to vector<32x1xf32>
    %42 = arith.addf %16, %41 : vector<32x1xf32>
    %c1_i32 = arith.constant 1 : i32
    %43 = tpu.reciprocal %42 {approx = true} : vector<32x1xf32> -> vector<32x1xf32>
    %44 = vector.broadcast %43 : vector<32x1xf32> to vector<32x128xf32>
    %45 = arith.mulf %38, %44 : vector<32x128xf32>
    %46 = arith.addf %10, %45 : vector<32x128xf32>
    %cst_23 = arith.constant 0.176776692 : f32
    %47 = vector.broadcast %cst_23 : f32 to vector<32x128xf32>
    %48 = arith.mulf %46, %47 : vector<32x128xf32>
    %49 = vector.shape_cast %48 : vector<32x128xf32> to vector<2x16x128xf32>
    %50 = arith.truncf %49 : vector<2x16x128xf32> to vector<2x16x128xbf16>
    %c0_24 = arith.constant 0 : index
    %c0_25 = arith.constant 0 : index
    %c0_26 = arith.constant 0 : index
    %51 = vector.load %arg9[%c0_24, %c0_25, %c0_26] : memref<2x16x128xbf16, #tpu.memory_space<vmem>>, vector<2x16x128xbf16>
    tpu.vector_store %arg9[%c0_24, %c0_25, %c0_26], %50 {strides = array<i32>} : memref<2x16x128xbf16, #tpu.memory_space<vmem>>, vector<2x16x128xbf16>,
    %52 = arith.addf %11, %45 : vector<32x128xf32>
    %53 = vector.shape_cast %52 : vector<32x128xf32> to vector<2x16x128xf32>
    %54 = arith.truncf %53 : vector<2x16x128xf32> to vector<2x16x128xbf16>
    %55 = arith.addf %12, %45 : vector<32x128xf32>
    %56 = vector.shape_cast %55 : vector<32x128xf32> to vector<2x16x128xf32>
    %57 = arith.truncf %56 : vector<2x16x128xf32> to vector<2x16x128xbf16>
    %c0_27 = arith.constant 0 : index
    %c128 = arith.constant 128 : index
    %58 = vector.load %arg5[%c0_27, %c128] : memref<128x132xbf16, #tpu.memory_space<vmem>>, vector<128x4xbf16>
    %c0_i32_28 = arith.constant 0 : i32
    %c16_i32 = arith.constant 16 : i32
    %59 = arith.muli %c0_i32_28, %c16_i32 : i32
    %60 = tpu.assume_multiple %59, 16 : i32
    %c0_29 = arith.constant 0 : index
    %61 = arith.index_cast %60 : i32 to index
    %c0_30 = arith.constant 0 : index
    %62 = vector.load %arg9[%c0_29, %61, %c0_30] : memref<2x16x128xbf16, #tpu.memory_space<vmem>>, vector<2x16x128xbf16>
    "tpu.trace_start"() <{level = 10 : i32, message = "bqd,bkd->bqk"}> : () -> ()
    %cst_31 = arith.constant dense<0.000000e+00> : vector<2x16x16xf32>
    %63 = tpu.matmul %62, %54, %cst_31 {dimension_numbers = #tpu.dot_dimension_numbers<[2], [2], [1], [1], [0, 0, 0, 1, 1, 1], [0], [0]>} : vector<2x16x128xbf16>, vector<2x16x128xbf16>, vector<2x16x16xf32> -> vector<2x16x16xf32>
    "tpu.trace_stop"() : () -> ()
    %cst_32 = arith.constant dense<0xFF800000> : vector<2x16xf32>
    %64 = vector.multi_reduction <maximumf>, %63, %cst_32 [2] : vector<2x16x16xf32> to vector<2x16xf32>
    %65 = vector.shape_cast %64 : vector<2x16xf32> to vector<2x16x1xf32>
    %66 = vector.broadcast %65 : vector<2x16x1xf32> to vector<2x16x16xf32>
    %67 = arith.subf %63, %66 : vector<2x16x16xf32>
    %68 = math.exp %67 : vector<2x16x16xf32>
    %cst_33 = arith.constant dense<0.000000e+00> : vector<2x16xf32>
    %69 = vector.multi_reduction <add>, %68, %cst_33 [2] : vector<2x16x16xf32> to vector<2x16xf32>
    %70 = vector.shape_cast %69 : vector<2x16xf32> to vector<2x16x1xf32>
    %71 = tpu.reciprocal %70 : vector<2x16x1xf32> -> vector<2x16x1xf32>
    %72 = vector.broadcast %71 : vector<2x16x1xf32> to vector<2x16x16xf32>
    %73 = arith.mulf %68, %72 : vector<2x16x16xf32>
    %74 = arith.truncf %73 : vector<2x16x16xf32> to vector<2x16x16xbf16>
    "tpu.trace_start"() <{level = 10 : i32, message = "bqk,bkd->bqd"}> : () -> ()
    %cst_34 = arith.constant dense<0.000000e+00> : vector<2x16x128xf32>
    %75 = tpu.matmul %74, %57, %cst_34 {dimension_numbers = #tpu.dot_dimension_numbers<[2], [1], [1], [2], [0, 0, 0, 1, 1, 2], [0], [0]>} : vector<2x16x16xbf16>, vector<2x16x128xbf16>, vector<2x16x128xf32> -> vector<2x16x128xf32>
    "tpu.trace_stop"() : () -> ()
    %76 = vector.extract_strided_slice %75 {offsets = [0, 0, 0], sizes = [2, 16, 32], strides = [1, 1, 1]} : vector<2x16x128xf32> to vector<2x16x32xf32>
    %c0_35 = arith.constant 0 : index
    %77 = arith.index_cast %60 : i32 to index
    %c0_36 = arith.constant 0 : index
    %78 = vector.load %arg8[%c0_35, %77, %c0_36] : memref<2x16x32xf32, #tpu.memory_space<vmem>>, vector<2x16x32xf32>
    tpu.vector_store %arg8[%c0_35, %77, %c0_36], %76 {strides = array<i32>} : memref<2x16x32xf32, #tpu.memory_space<vmem>>, vector<2x16x32xf32>,
    %c0_37 = arith.constant 0 : index
    %79 = arith.index_cast %60 : i32 to index
    %c0_38 = arith.constant 0 : index
    %80 = vector.load %arg1[%c0_37, %79, %c0_38] : memref<2x16x4xbf16, #tpu.memory_space<vmem>>, vector<2x16x4xbf16>
    %81 = vector.shape_cast %80 : vector<2x16x4xbf16> to vector<32x4xbf16>
    %82 = arith.extf %81 : vector<32x4xbf16> to vector<32x4xf32>
    %83 = vector.shape_cast %75 : vector<2x16x128xf32> to vector<32x128xf32>
    %84 = arith.truncf %83 : vector<32x128xf32> to vector<32x128xbf16>
    %cst_39 = arith.constant dense<0.000000e+00> : vector<32x4xf32>
    %85 = tpu.matmul %84, %58, %cst_39 {dimension_numbers = #tpu.dot_dimension_numbers<[1], [0], [0], [1], [0, 0, 1, 1], [], []>} : vector<32x128xbf16>, vector<128x4xbf16>, vector<32x4xf32> -> vector<32x4xf32>
    %86 = vector.broadcast %3 : vector<1x4xf32> to vector<32x4xf32>
    %87 = arith.addf %85, %86 : vector<32x4xf32>
    %88 = arith.addf %87, %82 : vector<32x4xf32>
    %89 = vector.shape_cast %88 : vector<32x4xf32> to vector<2x16x4xf32>
    %c0_40 = arith.constant 0 : index
    %90 = arith.index_cast %60 : i32 to index
    %c0_41 = arith.constant 0 : index
    %91 = vector.load %arg7[%c0_40, %90, %c0_41] : memref<2x16x4xf32, #tpu.memory_space<vmem>>, vector<2x16x4xf32>
    tpu.vector_store %arg7[%c0_40, %90, %c0_41], %89 {strides = array<i32>} : memref<2x16x4xf32, #tpu.memory_space<vmem>>, vector<2x16x4xf32>,
    %c1_i32_42 = arith.constant 1 : i32
    return
  }
  func.func @transform_0(%arg0: i32) -> (i32, i32, i32) {
    %c0_i32 = arith.constant 0 : i32
    %c0_i32_0 = arith.constant 0 : i32
    %c0_i32_1 = arith.constant 0 : i32
    return %arg0, %c0_i32, %c0_i32_0 : i32, i32, i32
  }
  func.func @transform_1(%arg0: i32) -> (i32, i32, i32, i32) {
    %c0_i32 = arith.constant 0 : i32
    %c0_i32_0 = arith.constant 0 : i32
    %c0_i32_1 = arith.constant 0 : i32
    %c0_i32_2 = arith.constant 0 : i32
    return %c0_i32, %arg0, %c0_i32_0, %c0_i32_1 : i32, i32, i32, i32
  }
  func.func @transform_2(%arg0: i32) -> (i32, i32) {
    %c0_i32 = arith.constant 0 : i32
    %c0_i32_0 = arith.constant 0 : i32
    %c0_i32_1 = arith.constant 0 : i32
    return %c0_i32, %c0_i32_0 : i32, i32
  }
  func.func @transform_3(%arg0: i32) -> (i32, i32) {
    %c0_i32 = arith.constant 0 : i32
    %c0_i32_0 = arith.constant 0 : i32
    %c0_i32_1 = arith.constant 0 : i32
    return %c0_i32, %c0_i32_0 : i32, i32
  }
  func.func @transform_4(%arg0: i32) -> (i32, i32) {
    %c0_i32 = arith.constant 0 : i32
    %c0_i32_0 = arith.constant 0 : i32
    %c0_i32_1 = arith.constant 0 : i32
    return %c0_i32, %c0_i32_0 : i32, i32
  }
  func.func @transform_5(%arg0: i32) -> (i32, i32) {
    %c0_i32 = arith.constant 0 : i32
    %c0_i32_0 = arith.constant 0 : i32
    %c0_i32_1 = arith.constant 0 : i32
    return %c0_i32, %c0_i32_0 : i32, i32
  }
  func.func @transform_6(%arg0: i32) -> (i32, i32, i32) {
    %c0_i32 = arith.constant 0 : i32
    %c0_i32_0 = arith.constant 0 : i32
    %c0_i32_1 = arith.constant 0 : i32
    return %arg0, %c0_i32, %c0_i32_0 : i32, i32, i32
  }
  func.func @transform_7(%arg0: i32) -> (i32, i32, i32) {
    %c0_i32 = arith.constant 0 : i32
    %c0_i32_0 = arith.constant 0 : i32
    %c0_i32_1 = arith.constant 0 : i32
    return %arg0, %c0_i32, %c0_i32_0 : i32, i32, i32
  }
}

</mosaic_0001>

<llo_original>
// kernel: tpu_custom_call.1
$region0: #{tpu_custom_call.1}
  #allocation0 [shape = 'u32[]', space=smem, size = 0x4, offset = 0x4, fixed_abs, tag = 'smem constant byte address 0x4 - core index']
  #allocation1 [shape = 'u32[144,128]{1,0:T(1,128)}', space=vmem, size = 0x12000, scoped, tag = 'internal scratch']
  #allocation2 [shape = 'bf16[2,16,128]{2,1,0:T(16,128)(2,1)}', space=vmem, size = 0x2000, scoped, tag = 'scratch operand']
  %s0 = inlined_call_operand.vmem [shape: bf16[4,16,4], index: 0, kind: input, shape index: {}]
  %s1 = inlined_call_operand.vmem [shape: bf16[8,4,16,4], index: 1, kind: input, shape index: {}]
  %s2 = inlined_call_operand.vmem [shape: bf16[4,384], index: 2, kind: input, shape index: {}]
  %s3 = inlined_call_operand.vmem [shape: bf16[4,128], index: 3, kind: input, shape index: {}]
  %s4 = inlined_call_operand.vmem [shape: bf16[128,132], index: 4, kind: input, shape index: {}]
  %s5 = inlined_call_operand.vmem [shape: f32[4,384], index: 5, kind: input, shape index: {}]
  %s6 = inlined_call_operand.vmem [shape: f32[4,16,4], index: 6, kind: output, shape index: {0}]
  %s7 = inlined_call_operand.hbm [shape: f32[4,16,32], index: 7, kind: output, shape index: {1}]
  %8 = xla_tuple %s6, %s7
  %s9 = sld [smem:[#allocation0]]
  $region106: #{tpu_custom_call.1} parent=0
    _
  %s11 = ssub.s32 1, %s9
  %s12 = scalar_select 0, %s11, %s9
  $region1: #{tpu_custom_call.1} parent=0
    #allocation3 [shape = 'u8[131072]{0}', space=vmem, size = 0x20000, scoped, tag = 'input window, operand 1']
    #allocation4 [shape = 'u8[32768]{0}', space=vmem, size = 0x8000, scoped, tag = 'output window, operand 1']
    #allocation5 [shape = 's32[2]{0}', space=sflag, size = 0x8, scoped, tag = 'scoped memory for tpu_custom_call.1']
    %13 = vsyncpa [#allocation5], 0
    %s14 = scalar_lea.sflag [#allocation5], 1
    %15 = vsyncpa %s14, 0
    loop: start=0, step=1, limit=4
    $region2: #{tpu_custom_call.1} parent=1 // loop_pre_header
      _
    $region3: #{tpu_custom_call.1} parent=1 // loop_header
      %s17 = sphi 0, %s21
      %p18 = scmp.ge.s32.totalorder %s17, 4
      %s27 = sphi 0, %s29
      %s30 = sphi 0, %s27
      %s31 = sphi 0, %s30
      %s47 = sphi 0, %s31
      %s53 = sphi 0, %s55
      %s56 = sphi 0, %s53
      %s57 = sphi 0, %s56
      %s73 = sphi 0, %s57
      %s77 = sphi 0, %s77
      %s79 = sphi 0, %s77
      %s80 = sphi 0, %s79
      %s94 = sphi 0, %s80
      %s98 = sphi 0, %s98
      %s100 = sphi 0, %s98
      %s101 = sphi 0, %s100
      %s115 = sphi 0, %s101
      %s119 = sphi 0, %s119
      %s121 = sphi 0, %s119
      %s122 = sphi 0, %s121
      %s136 = sphi 0, %s122
      %s140 = sphi 0, %s140
      %s142 = sphi 0, %s140
      %s143 = sphi 0, %s142
      %s157 = sphi 0, %s143
      %s163 = sphi 0, %s165
      %s166 = sphi 0, %s163
      %s167 = sphi 0, %s166
      %s183 = sphi 0, %s167
      %s189 = sphi 0, %s191
      %s192 = sphi 0, %s189
      %s193 = sphi 0, %s192
      %s209 = sphi 0, %s193
    $region4: #{tpu_custom_call.1} parent=1 // loop_header_branch
      %20 = sbr.rel (%p18) target = $region8
    $region5: #{tpu_custom_call.1} parent=1 // loop_body
      %s22 = ssub.s32 %s17, 1
      %s23 = ssub.s32 %s17, 2
      %s24 = sadd.s32 %s17, 1
      %s25 = ssub.s32 %s17, %s24
      %p26 = scmp.eq.s32.totalorder %s25, 0
      %s28 = sadd.s32 %s27, 1
      %s29 = scalar_select %p26, %s27, %s28
      %p32 = pneg %p26
      %p33 = scmp.eq.s32.totalorder %s17, 1
      %p34 = por %p32, %p33
      %p35 = scmp.ne.s32.totalorder %s27, %s30
      %p36 = scmp.eq.s32.totalorder %s17, 0
      %p37 = por %p35, %p36
      %p38 = scmp.ne.s32.totalorder %s27, %s30
      %p39 = scmp.eq.s32.totalorder %s22, 1
      %p40 = por %p38, %p39
      %p41 = scmp.ne.s32.totalorder %s30, %s31
      %p42 = scmp.eq.s32.totalorder %s22, 0
      %p43 = por %p41, %p42
      %p44 = scmp.ne.s32.totalorder %s30, %s31
      %p45 = scmp.eq.s32.totalorder %s23, 1
      %p46 = por %p44, %p45
      %p48 = scmp.ne.s32.totalorder %s31, %s47
      %p49 = scmp.eq.s32.totalorder %s23, 0
      %p50 = por %p48, %p49
      %s51 = ssub.s32 %s17, %s24
      %p52 = scmp.eq.s32.totalorder %s51, 0
      %s54 = sadd.s32 %s53, 1
      %s55 = scalar_select %p52, %s53, %s54
      %p58 = pneg %p52
      %p59 = scmp.eq.s32.totalorder %s17, 1
      %p60 = por %p58, %p59
      %p61 = scmp.ne.s32.totalorder %s53, %s56
      %p62 = scmp.eq.s32.totalorder %s17, 0
      %p63 = por %p61, %p62
      %p64 = scmp.ne.s32.totalorder %s53, %s56
      %p65 = scmp.eq.s32.totalorder %s22, 1
      %p66 = por %p64, %p65
      %p67 = scmp.ne.s32.totalorder %s56, %s57
      %p68 = scmp.eq.s32.totalorder %s22, 0
      %p69 = por %p67, %p68
      %p70 = scmp.ne.s32.totalorder %s56, %s57
      %p71 = scmp.eq.s32.totalorder %s23, 1
      %p72 = por %p70, %p71
      %p74 = scmp.ne.s32.totalorder %s57, %s73
      %p75 = scmp.eq.s32.totalorder %s23, 0
      %p76 = por %p74, %p75
      %s78 = sadd.s32 %s77, 1
      %p81 = scmp.eq.s32.totalorder %s17, 1
      %p82 = scmp.ne.s32.totalorder %s77, %s79
      %p83 = scmp.eq.s32.totalorder %s17, 0
      %p84 = por %p82, %p83
      %p85 = scmp.ne.s32.totalorder %s77, %s79
      %p86 = scmp.eq.s32.totalorder %s22, 1
      %p87 = por %p85, %p86
      %p88 = scmp.ne.s32.totalorder %s79, %s80
      %p89 = scmp.eq.s32.totalorder %s22, 0
      %p90 = por %p88, %p89
      %p91 = scmp.ne.s32.totalorder %s79, %s80
      %p92 = scmp.eq.s32.totalorder %s23, 1
      %p93 = por %p91, %p92
      %p95 = scmp.ne.s32.totalorder %s80, %s94
      %p96 = scmp.eq.s32.totalorder %s23, 0
      %p97 = por %p95, %p96
      %s99 = sadd.s32 %s98, 1
      %p102 = scmp.eq.s32.totalorder %s17, 1
      %p103 = scmp.ne.s32.totalorder %s98, %s100
      %p104 = scmp.eq.s32.totalorder %s17, 0
      %p105 = por %p103, %p104
      %p106 = scmp.ne.s32.totalorder %s98, %s100
      %p107 = scmp.eq.s32.totalorder %s22, 1
      %p108 = por %p106, %p107
      %p109 = scmp.ne.s32.totalorder %s100, %s101
      %p110 = scmp.eq.s32.totalorder %s22, 0
      %p111 = por %p109, %p110
      %p112 = scmp.ne.s32.totalorder %s100, %s101
      %p113 = scmp.eq.s32.totalorder %s23, 1
      %p114 = por %p112, %p113
      %p116 = scmp.ne.s32.totalorder %s101, %s115
      %p117 = scmp.eq.s32.totalorder %s23, 0
      %p118 = por %p116, %p117
      %s120 = sadd.s32 %s119, 1
      %p123 = scmp.eq.s32.totalorder %s17, 1
      %p124 = scmp.ne.s32.totalorder %s119, %s121
      %p125 = scmp.eq.s32.totalorder %s17, 0
      %p126 = por %p124, %p125
      %p127 = scmp.ne.s32.totalorder %s119, %s121
      %p128 = scmp.eq.s32.totalorder %s22, 1
      %p129 = por %p127, %p128
      %p130 = scmp.ne.s32.totalorder %s121, %s122
      %p131 = scmp.eq.s32.totalorder %s22, 0
      %p132 = por %p130, %p131
      %p133 = scmp.ne.s32.totalorder %s121, %s122
      %p134 = scmp.eq.s32.totalorder %s23, 1
      %p135 = por %p133, %p134
      %p137 = scmp.ne.s32.totalorder %s122, %s136
      %p138 = scmp.eq.s32.totalorder %s23, 0
      %p139 = por %p137, %p138
      %s141 = sadd.s32 %s140, 1
      %p144 = scmp.eq.s32.totalorder %s17, 1
      %p145 = scmp.ne.s32.totalorder %s140, %s142
      %p146 = scmp.eq.s32.totalorder %s17, 0
      %p147 = por %p145, %p146
      %p148 = scmp.ne.s32.totalorder %s140, %s142
      %p149 = scmp.eq.s32.totalorder %s22, 1
      %p150 = por %p148, %p149
      %p151 = scmp.ne.s32.totalorder %s142, %s143
      %p152 = scmp.eq.s32.totalorder %s22, 0
      %p153 = por %p151, %p152
      %p154 = scmp.ne.s32.totalorder %s142, %s143
      %p155 = scmp.eq.s32.totalorder %s23, 1
      %p156 = por %p154, %p155
      %p158 = scmp.ne.s32.totalorder %s143, %s157
      %p159 = scmp.eq.s32.totalorder %s23, 0
      %p160 = por %p158, %p159
      %s161 = ssub.s32 %s17, %s24
      %p162 = scmp.eq.s32.totalorder %s161, 0
      %s164 = sadd.s32 %s163, 1
      %s165 = scalar_select %p162, %s163, %s164
      %p168 = pneg %p162
      %p169 = scmp.eq.s32.totalorder %s17, 1
      %p170 = por %p168, %p169
      %p171 = scmp.ne.s32.totalorder %s163, %s166
      %p172 = scmp.eq.s32.totalorder %s17, 0
      %p173 = por %p171, %p172
      %p174 = scmp.ne.s32.totalorder %s163, %s166
      %p175 = scmp.eq.s32.totalorder %s22, 1
      %p176 = por %p174, %p175
      %p177 = scmp.ne.s32.totalorder %s166, %s167
      %p178 = scmp.eq.s32.totalorder %s22, 0
      %p179 = por %p177, %p178
      %p180 = scmp.ne.s32.totalorder %s166, %s167
      %p181 = scmp.eq.s32.totalorder %s23, 1
      %p182 = por %p180, %p181
      %p184 = scmp.ne.s32.totalorder %s167, %s183
      %p185 = scmp.eq.s32.totalorder %s23, 0
      %p186 = por %p184, %p185
      %s187 = ssub.s32 %s17, %s24
      %p188 = scmp.eq.s32.totalorder %s187, 0
      %s190 = sadd.s32 %s189, 1
      %s191 = scalar_select %p188, %s189, %s190
      %p194 = pneg %p188
      %p195 = scmp.eq.s32.totalorder %s17, 1
      %p196 = por %p194, %p195
      %p197 = scmp.ne.s32.totalorder %s189, %s192
      %p198 = scmp.eq.s32.totalorder %s17, 0
      %p199 = por %p197, %p198
      %p200 = scmp.ne.s32.totalorder %s189, %s192
      %p201 = scmp.eq.s32.totalorder %s22, 1
      %p202 = por %p200, %p201
      %p203 = scmp.ne.s32.totalorder %s192, %s193
      %p204 = scmp.eq.s32.totalorder %s22, 0
      %p205 = por %p203, %p204
      %p206 = scmp.ne.s32.totalorder %s192, %s193
      %p207 = scmp.eq.s32.totalorder %s23, 1
      %p208 = por %p206, %p207
      %p210 = scmp.ne.s32.totalorder %s193, %s209
      %p211 = scmp.eq.s32.totalorder %s23, 0
      %p212 = por %p210, %p211
      %p213 = scmp.le.s32.totalorder 1, %s17
      %p214 = scmp.lt.s32.totalorder %s17, 3
      %p215 = pnand %p213, %p214
      %p216 = pneg %p215
      // Predicated region
      $region9: #{tpu_custom_call.1} parent=5 // pred_check
        _
      $region10: #{tpu_custom_call.1} parent=5 // pred_check_branch
        %218 = sbr.rel (%p215) target = $region12
      $region11: #{tpu_custom_call.1} parent=5 // pred_region
        %s219 = ssub.s32 %s17, 1
        // Predicated region
        $region13: #{tpu_custom_call.1} parent=11 // pred_check
          %p220 = pneg %p90
        $region14: #{tpu_custom_call.1} parent=11 // pred_check_branch
          %222 = sbr.rel (%p220) target = $region16
        $region15: #{tpu_custom_call.1} parent=11 // pred_region
          _
        $region16: #{tpu_custom_call.1} parent=11 // pred_fallthru
          _
        // Predicated region
        $region17: #{tpu_custom_call.1} parent=11 // pred_check
          %p223 = pneg %p111
        $region18: #{tpu_custom_call.1} parent=11 // pred_check_branch
          %225 = sbr.rel (%p223) target = $region20
        $region19: #{tpu_custom_call.1} parent=11 // pred_region
          _
        $region20: #{tpu_custom_call.1} parent=11 // pred_fallthru
          _
        // Predicated region
        $region21: #{tpu_custom_call.1} parent=11 // pred_check
          %p226 = pneg %p132
        $region22: #{tpu_custom_call.1} parent=11 // pred_check_branch
          %228 = sbr.rel (%p226) target = $region24
        $region23: #{tpu_custom_call.1} parent=11 // pred_region
          _
        $region24: #{tpu_custom_call.1} parent=11 // pred_fallthru
          _
        // Predicated region
        $region25: #{tpu_custom_call.1} parent=11 // pred_check
          %p229 = pneg %p153
        $region26: #{tpu_custom_call.1} parent=11 // pred_check_branch
          %231 = sbr.rel (%p229) target = $region28
        $region27: #{tpu_custom_call.1} parent=11 // pred_region
          _
        $region28: #{tpu_custom_call.1} parent=11 // pred_fallthru
          _
      $region12: #{tpu_custom_call.1} parent=5 // pred_fallthru
        _
      %p232 = scmp.lt.s32.totalorder %s17, 2
      // Predicated region
      $region29: #{tpu_custom_call.1} parent=5 // pred_check
        %p233 = pneg %p232
      $region30: #{tpu_custom_call.1} parent=5 // pred_check_branch
        %235 = sbr.rel (%p233) target = $region32
      $region31: #{tpu_custom_call.1} parent=5 // pred_region
        // Predicated region
        $region33: #{tpu_custom_call.1} parent=31 // pred_check
          %p236 = pneg %p37
        $region34: #{tpu_custom_call.1} parent=31 // pred_check_branch
          %238 = sbr.rel (%p236) target = $region36
        $region35: #{tpu_custom_call.1} parent=31 // pred_region
          %s239 = smul.u32 2, %s17
          %p240 = scmp.lt.s32.totalorder %s239, 3
          %s241 = scalar_select %p240, %s239, 3
          %s242 = smul.addr %s241, 2
          %s243 = smul.addr %s242, 4
          %s244 = scalar_lea.vmem %s0, %s243
          %s245 = smul.u32 2, %s17
        $region36: #{tpu_custom_call.1} parent=31 // pred_fallthru
          _
        // Predicated region
        $region37: #{tpu_custom_call.1} parent=31 // pred_check
          %p246 = pneg %p63
        $region38: #{tpu_custom_call.1} parent=31 // pred_check_branch
          %248 = sbr.rel (%p246) target = $region40
        $region39: #{tpu_custom_call.1} parent=31 // pred_region
          %s249 = sand.u32 %s53, 1
          %s250 = sand.u32 %s53, 1
          %s251 = smul.addr %s250, 128
          %s252 = scalar_lea.vmem [#allocation3], %s251
          %s253 = smul.u32 2, %s17
          %s254 = smul.addr %s253, 2
          %s255 = smul.addr %s254, 4
          %s256 = scalar_lea.vmem %s1, %s255
          // Predicated region
          $region41: #{tpu_custom_call.1} parent=39 // pred_check
            _
          $region42: #{tpu_custom_call.1} parent=39 // pred_check_branch
            %258 = sbr.rel (0) target = $region44
          $region43: #{tpu_custom_call.1} parent=39 // pred_region
            // Predicated region
            $region45: #{tpu_custom_call.1} parent=43 // pred_check
              _
            $region46: #{tpu_custom_call.1} parent=43 // pred_check_branch
              %260 = sbr.rel target = $region48
            $region47: #{tpu_custom_call.1} parent=43 // pred_region
              // Predicated region
              $region60: #{tpu_custom_call.1} parent=47 // pred_check
                _
              $region61: #{tpu_custom_call.1} parent=47 // pred_check_branch
                %337 = sbr.rel (0) target = $region63
              $region62: #{tpu_custom_call.1} parent=47 // pred_region
                loop: start=0, step=1, limit=1
                $region64: #{tpu_custom_call.1} parent=62 // loop_pre_header
                  _
                $region65: #{tpu_custom_call.1} parent=62 // loop_header
                  %s339 = sphi 0, %s343
                  %p340 = scmp.ge.s32.totalorder %s339, 1
                  %s344 = sphi %s256, %s256
                  %s345 = sphi %s252, %s252
                $region66: #{tpu_custom_call.1} parent=62 // loop_header_branch
                  %342 = sbr.rel (%p340) target = $region70
                $region67: #{tpu_custom_call.1} parent=62 // loop_body
                  _
                $region68: #{tpu_custom_call.1} parent=62 // loop_footer
                  %s343 = sadd.s32 1, %s339
                $region69: #{tpu_custom_call.1} parent=62 // loop_footer_branch
                  %338 = sbr.rel target = $region65
                $region70: #{tpu_custom_call.1} parent=62 // loop_exit
                  _
                loop: start=0, step=1, limit=1
                $region71: #{tpu_custom_call.1} parent=62 // loop_pre_header
                  _
                $region72: #{tpu_custom_call.1} parent=62 // loop_header
                  %s348 = sphi 0, %s352
                  %p349 = scmp.ge.s32.totalorder %s348, 1
                  %s353 = sphi %s256, %s256
                  %s354 = sphi %s252, %s252
                $region73: #{tpu_custom_call.1} parent=62 // loop_header_branch
                  %351 = sbr.rel (%p349) target = $region77
                $region74: #{tpu_custom_call.1} parent=62 // loop_body
                  %v355 = vld [vmem:[%s353] sm:$0xf]
                  %356 = vst [vmem:[%s354] sm:$0xf] %v355
                  %v357 = vld [vmem:[%s353 + $0x4] sm:$0xf]
                  %358 = vst [vmem:[%s354 + $0x4] sm:$0xf] %v357
                  %v359 = vld [vmem:[%s353 + $0x8] sm:$0xf]
                  %360 = vst [vmem:[%s354 + $0x8] sm:$0xf] %v359
                  %v361 = vld [vmem:[%s353 + $0xc] sm:$0xf]
                  %362 = vst [vmem:[%s354 + $0xc] sm:$0xf] %v361
                  %v363 = vld [vmem:[%s353 + $0x20] sm:$0xf]
                  %364 = vst [vmem:[%s354 + $0x10] sm:$0xf] %v363
                  %v365 = vld [vmem:[%s353 + $0x24] sm:$0xf]
                  %366 = vst [vmem:[%s354 + $0x14] sm:$0xf] %v365
                  %v367 = vld [vmem:[%s353 + $0x28] sm:$0xf]
                  %368 = vst [vmem:[%s354 + $0x18] sm:$0xf] %v367
                  %v369 = vld [vmem:[%s353 + $0x2c] sm:$0xf]
                  %370 = vst [vmem:[%s354 + $0x1c] sm:$0xf] %v369
                  %v371 = vld [vmem:[%s353 + $0x40] sm:$0xf]
                  %372 = vst [vmem:[%s354 + $0x20] sm:$0xf] %v371
                  %v373 = vld [vmem:[%s353 + $0x44] sm:$0xf]
                  %374 = vst [vmem:[%s354 + $0x24] sm:$0xf] %v373
                  %v375 = vld [vmem:[%s353 + $0x48] sm:$0xf]
                  %376 = vst [vmem:[%s354 + $0x28] sm:$0xf] %v375
                  %v377 = vld [vmem:[%s353 + $0x4c] sm:$0xf]
                  %378 = vst [vmem:[%s354 + $0x2c] sm:$0xf] %v377
                  %v379 = vld [vmem:[%s353 + $0x60] sm:$0xf]
                  %380 = vst [vmem:[%s354 + $0x30] sm:$0xf] %v379
                  %v381 = vld [vmem:[%s353 + $0x64] sm:$0xf]
                  %382 = vst [vmem:[%s354 + $0x34] sm:$0xf] %v381
                  %v383 = vld [vmem:[%s353 + $0x68] sm:$0xf]
                  %384 = vst [vmem:[%s354 + $0x38] sm:$0xf] %v383
                  %v385 = vld [vmem:[%s353 + $0x6c] sm:$0xf]
                  %386 = vst [vmem:[%s354 + $0x3c] sm:$0xf] %v385
                  %v387 = vld [vmem:[%s353 + $0x80] sm:$0xf]
                  %388 = vst [vmem:[%s354 + $0x40] sm:$0xf] %v387
                  %v389 = vld [vmem:[%s353 + $0x84] sm:$0xf]
                  %390 = vst [vmem:[%s354 + $0x44] sm:$0xf] %v389
                  %v391 = vld [vmem:[%s353 + $0x88] sm:$0xf]
                  %392 = vst [vmem:[%s354 + $0x48] sm:$0xf] %v391
                  %v393 = vld [vmem:[%s353 + $0x8c] sm:$0xf]
                  %394 = vst [vmem:[%s354 + $0x4c] sm:$0xf] %v393
                  %v395 = vld [vmem:[%s353 + $0xa0] sm:$0xf]
                  %396 = vst [vmem:[%s354 + $0x50] sm:$0xf] %v395
                  %v397 = vld [vmem:[%s353 + $0xa4] sm:$0xf]
                  %398 = vst [vmem:[%s354 + $0x54] sm:$0xf] %v397
                  %v399 = vld [vmem:[%s353 + $0xa8] sm:$0xf]
                  %400 = vst [vmem:[%s354 + $0x58] sm:$0xf] %v399
                  %v401 = vld [vmem:[%s353 + $0xac] sm:$0xf]
                  %402 = vst [vmem:[%s354 + $0x5c] sm:$0xf] %v401
                  %v403 = vld [vmem:[%s353 + $0xc0] sm:$0xf]
                  %404 = vst [vmem:[%s354 + $0x60] sm:$0xf] %v403
                  %v405 = vld [vmem:[%s353 + $0xc4] sm:$0xf]
                  %406 = vst [vmem:[%s354 + $0x64] sm:$0xf] %v405
                  %v407 = vld [vmem:[%s353 + $0xc8] sm:$0xf]
                  %408 = vst [vmem:[%s354 + $0x68] sm:$0xf] %v407
                  %v409 = vld [vmem:[%s353 + $0xcc] sm:$0xf]
                  %410 = vst [vmem:[%s354 + $0x6c] sm:$0xf] %v409
                  %v411 = vld [vmem:[%s353 + $0xe0] sm:$0xf]
                  %412 = vst [vmem:[%s354 + $0x70] sm:$0xf] %v411
                  %v413 = vld [vmem:[%s353 + $0xe4] sm:$0xf]
                  %414 = vst [vmem:[%s354 + $0x74] sm:$0xf] %v413
                  %v415 = vld [vmem:[%s353 + $0xe8] sm:$0xf]
                  %416 = vst [vmem:[%s354 + $0x78] sm:$0xf] %v415
                  %v417 = vld [vmem:[%s353 + $0xec] sm:$0xf]
                  %418 = vst [vmem:[%s354 + $0x7c] sm:$0xf] %v417
                $region75: #{tpu_custom_call.1} parent=62 // loop_footer
                  %s352 = sadd.s32 1, %s348
                $region76: #{tpu_custom_call.1} parent=62 // loop_footer_branch
                  %347 = sbr.rel target = $region72
                $region77: #{tpu_custom_call.1} parent=62 // loop_exit
                  _
              $region63: #{tpu_custom_call.1} parent=47 // pred_fallthru
                _
            $region48: #{tpu_custom_call.1} parent=43 // pred_fallthru
              _
            // Predicated region
            $region49: #{tpu_custom_call.1} parent=43 // pred_check
              _
            $region50: #{tpu_custom_call.1} parent=43 // pred_check_branch
              %262 = sbr.rel (0) target = $region52
            $region51: #{tpu_custom_call.1} parent=43 // pred_region
              loop: start=0, step=1, limit=1
              $region53: #{tpu_custom_call.1} parent=51 // loop_pre_header
                _
              $region54: #{tpu_custom_call.1} parent=51 // loop_header
                %s265 = sphi 0, %s269
                %p266 = scmp.ge.s32.totalorder %s265, 1
                %s270 = sphi %s256, %s256
                %s271 = sphi %s252, %s252
              $region55: #{tpu_custom_call.1} parent=51 // loop_header_branch
                %268 = sbr.rel (%p266) target = $region59
              $region56: #{tpu_custom_call.1} parent=51 // loop_body
                %v272 = vld [vmem:[%s270] sm:$0xf]
                %273 = vst [vmem:[%s271] sm:$0xf] %v272
                %v274 = vld [vmem:[%s270 + $0x4] sm:$0xf]
                %275 = vst [vmem:[%s271 + $0x4] sm:$0xf] %v274
                %v276 = vld [vmem:[%s270 + $0x8] sm:$0xf]
                %277 = vst [vmem:[%s271 + $0x8] sm:$0xf] %v276
                %v278 = vld [vmem:[%s270 + $0xc] sm:$0xf]
                %279 = vst [vmem:[%s271 + $0xc] sm:$0xf] %v278
                %v280 = vld [vmem:[%s270 + $0x20] sm:$0xf]
                %281 = vst [vmem:[%s271 + $0x10] sm:$0xf] %v280
                %v282 = vld [vmem:[%s270 + $0x24] sm:$0xf]
                %283 = vst [vmem:[%s271 + $0x14] sm:$0xf] %v282
                %v284 = vld [vmem:[%s270 + $0x28] sm:$0xf]
                %285 = vst [vmem:[%s271 + $0x18] sm:$0xf] %v284
                %v286 = vld [vmem:[%s270 + $0x2c] sm:$0xf]
                %287 = vst [vmem:[%s271 + $0x1c] sm:$0xf] %v286
                %v288 = vld [vmem:[%s270 + $0x40] sm:$0xf]
                %289 = vst [vmem:[%s271 + $0x20] sm:$0xf] %v288
                %v290 = vld [vmem:[%s270 + $0x44] sm:$0xf]
                %291 = vst [vmem:[%s271 + $0x24] sm:$0xf] %v290
                %v292 = vld [vmem:[%s270 + $0x48] sm:$0xf]
                %293 = vst [vmem:[%s271 + $0x28] sm:$0xf] %v292
                %v294 = vld [vmem:[%s270 + $0x4c] sm:$0xf]
                %295 = vst [vmem:[%s271 + $0x2c] sm:$0xf] %v294
                %v296 = vld [vmem:[%s270 + $0x60] sm:$0xf]
                %297 = vst [vmem:[%s271 + $0x30] sm:$0xf] %v296
                %v298 = vld [vmem:[%s270 + $0x64] sm:$0xf]
                %299 = vst [vmem:[%s271 + $0x34] sm:$0xf] %v298
                %v300 = vld [vmem:[%s270 + $0x68] sm:$0xf]
                %301 = vst [vmem:[%s271 + $0x38] sm:$0xf] %v300
                %v302 = vld [vmem:[%s270 + $0x6c] sm:$0xf]
                %303 = vst [vmem:[%s271 + $0x3c] sm:$0xf] %v302
                %v304 = vld [vmem:[%s270 + $0x80] sm:$0xf]
                %305 = vst [vmem:[%s271 + $0x40] sm:$0xf] %v304
                %v306 = vld [vmem:[%s270 + $0x84] sm:$0xf]
                %307 = vst [vmem:[%s271 + $0x44] sm:$0xf] %v306
                %v308 = vld [vmem:[%s270 + $0x88] sm:$0xf]
                %309 = vst [vmem:[%s271 + $0x48] sm:$0xf] %v308
                %v310 = vld [vmem:[%s270 + $0x8c] sm:$0xf]
                %311 = vst [vmem:[%s271 + $0x4c] sm:$0xf] %v310
                %v312 = vld [vmem:[%s270 + $0xa0] sm:$0xf]
                %313 = vst [vmem:[%s271 + $0x50] sm:$0xf] %v312
                %v314 = vld [vmem:[%s270 + $0xa4] sm:$0xf]
                %315 = vst [vmem:[%s271 + $0x54] sm:$0xf] %v314
                %v316 = vld [vmem:[%s270 + $0xa8] sm:$0xf]
                %317 = vst [vmem:[%s271 + $0x58] sm:$0xf] %v316
                %v318 = vld [vmem:[%s270 + $0xac] sm:$0xf]
                %319 = vst [vmem:[%s271 + $0x5c] sm:$0xf] %v318
                %v320 = vld [vmem:[%s270 + $0xc0] sm:$0xf]
                %321 = vst [vmem:[%s271 + $0x60] sm:$0xf] %v320
                %v322 = vld [vmem:[%s270 + $0xc4] sm:$0xf]
                %323 = vst [vmem:[%s271 + $0x64] sm:$0xf] %v322
                %v324 = vld [vmem:[%s270 + $0xc8] sm:$0xf]
                %325 = vst [vmem:[%s271 + $0x68] sm:$0xf] %v324
                %v326 = vld [vmem:[%s270 + $0xcc] sm:$0xf]
                %327 = vst [vmem:[%s271 + $0x6c] sm:$0xf] %v326
                %v328 = vld [vmem:[%s270 + $0xe0] sm:$0xf]
                %329 = vst [vmem:[%s271 + $0x70] sm:$0xf] %v328
                %v330 = vld [vmem:[%s270 + $0xe4] sm:$0xf]
                %331 = vst [vmem:[%s271 + $0x74] sm:$0xf] %v330
                %v332 = vld [vmem:[%s270 + $0xe8] sm:$0xf]
                %333 = vst [vmem:[%s271 + $0x78] sm:$0xf] %v332
                %v334 = vld [vmem:[%s270 + $0xec] sm:$0xf]
                %335 = vst [vmem:[%s271 + $0x7c] sm:$0xf] %v334
              $region57: #{tpu_custom_call.1} parent=51 // loop_footer
                %s269 = sadd.s32 1, %s265
              $region58: #{tpu_custom_call.1} parent=51 // loop_footer_branch
                %264 = sbr.rel target = $region54
              $region59: #{tpu_custom_call.1} parent=51 // loop_exit
                _
            $region52: #{tpu_custom_call.1} parent=43 // pred_fallthru
              _
          $region44: #{tpu_custom_call.1} parent=39 // pred_fallthru
            _
          %419 = vnop
        $region40: #{tpu_custom_call.1} parent=31 // pred_fallthru
          _
      $region32: #{tpu_custom_call.1} parent=5 // pred_fallthru
        _
      %p420 = scmp.le.s32.totalorder 1, %s17
      %p421 = scmp.lt.s32.totalorder %s17, 3
      %p422 = pnand %p420, %p421
      %p423 = pneg %p422
      // Predicated region
      $region78: #{tpu_custom_call.1} parent=5 // pred_check
        _
      $region79: #{tpu_custom_call.1} parent=5 // pred_check_branch
        %425 = sbr.rel (%p422) target = $region81
      $region80: #{tpu_custom_call.1} parent=5 // pred_region
        %s426 = ssub.s32 %s17, 1
        %s427 = sand.u32 %s56, 1
        %s428 = sand.u32 %s56, 1
        %s429 = smul.addr %s428, 128
        %s430 = scalar_lea.vmem [#allocation3], %s429
        // Predicated region
        $region82: #{tpu_custom_call.1} parent=80 // pred_check
          %p431 = pneg %p69
        $region83: #{tpu_custom_call.1} parent=80 // pred_check_branch
          %433 = sbr.rel (%p431) target = $region85
        $region84: #{tpu_custom_call.1} parent=80 // pred_region
          _
        $region85: #{tpu_custom_call.1} parent=80 // pred_fallthru
          _
        %s434 = smul.u32 2, %s22
        %p435 = scmp.lt.s32.totalorder %s434, 3
        %s436 = scalar_select %p435, %s434, 3
        %s437 = smul.addr %s436, 2
        %s438 = smul.addr %s437, 4
        %s439 = scalar_lea.vmem %s0, %s438
        %p440 = pneg %p43
        %p441 = pneg %p40
        %s442 = sand.u32 %s56, 1
        %s443 = sand.u32 %s56, 1
        %s444 = smul.addr %s443, 128
        %s445 = scalar_lea.vmem [#allocation3], %s444
        %p446 = pneg %p69
        %p447 = pneg %p66
        %p448 = pneg %p90
        %p449 = pneg %p87
        %p450 = pneg %p111
        %p451 = pneg %p108
        %p452 = pneg %p132
        %p453 = pneg %p129
        %p454 = pneg %p153
        %p455 = pneg %p150
        %p456 = pneg %p179
        %p457 = pneg %p176
        %s458 = smul.u32 2, %s22
        %p459 = scmp.lt.s32.totalorder %s458, 3
        %s460 = scalar_select %p459, %s458, 3
        %s461 = smul.addr %s460, 2
        %s462 = smul.addr %s461, 8
        %s463 = scalar_lea.vmem %s6, %s462
        %p464 = pneg %p205
        %p465 = pneg %p202
        %s466 = sand.u32 %s192, 1
        %s467 = scalar_lea.sflag [#allocation5], %s466
        %s468 = sand.u32 %s192, 1
        %s469 = smul.addr %s468, 32
        %s470 = scalar_lea.vmem [#allocation4], %s469
        %s471 = smul.u32 2, %s22
        %p472 = scmp.lt.s32.totalorder %s471, 3
        %s473 = scalar_select %p472, %s471, 3
        %s474 = smul.addr %s473, 2
        %s475 = smul.addr %s474, 4
        %s476 = scalar_lea.vmem %s0, %s475
        %s477 = smul.u32 2, %s22
        %s478 = smul.u32 2, %s22
        %s479 = smul.u32 2, %s22
        %p480 = scmp.lt.s32.totalorder %s479, 3
        %s481 = scalar_select %p480, %s479, 3
        %s482 = smul.addr %s481, 2
        %s483 = smul.addr %s482, 8
        %s484 = scalar_lea.vmem %s6, %s483
        %s485 = smul.u32 2, %s22
        %s486 = smul.u32 2, %s22
        %v488 = vld [vmem:[%s5] ss:$4 sm:$0x7]
        %v489 = vld [vmem:[%s5 + $0x1] sm:$0x1]
        %v490 = vld [vmem:[%s5 + $0x2] sm:$0x1]
        %v491 = vld [vmem:[%s5 + $0x3] sm:$0x1]
        %v492 = vld [vmem:[%s476] sm:$0xf]
        %v493 = vld [vmem:[%s476 + $0x4] sm:$0xf]
        %v494 = vld [vmem:[%s476 + $0x8] sm:$0xf]
        %v495 = vld [vmem:[%s476 + $0xc] sm:$0xf]
        %v496 = vld [vmem:[%s2] sm:$0x3f]
        %v498 = vlaneseq
        %v499 = vshrl.u32 %v498, 7
        %v500 = vsub.s32 0, %v499
        %v501 = vrot.slane %v488, %v500
        %v502 = vlaneseq
        %v503 = vshrl.u32 %v502, 7
        %v504 = vsub.s32 1, %v503
        %v505 = vrot.slane %v488, %v504
        %v506 = vlaneseq
        %v507 = vshrl.u32 %v506, 7
        %v508 = vsub.s32 2, %v507
        %v509 = vrot.slane %v488, %v508
        %v517 = vunpack.c.l.b16 %v492
        %v518 = vunpack.c.l.b16 %v493
        %v519 = vunpack.c.l.b16 %v494
        %v520 = vunpack.c.l.b16 %v495
        %v521 = vpack.c.b16 %v518, %v517
        %v522 = vpack.c.b16 %v520, %v519
        %v524 = vcombine.high %v496, %v496
        %v526 = vunpack.c.l.s4 1983009808
        %v527 = vunpack.c.0.s8 %v526
        %v528 = vlaneseq
        %v529 = vshrl.u32 %v528, 7
        %v530 = vsub.s32 %v527, %v529
        %v531 = vrot.slane %v496, %v530
        %v533 = vunpack.c.l.s4 1983009808
        %v534 = vunpack.c.0.s8 %v533
        %v535 = vlaneseq
        %v536 = vshrl.u32 %v535, 7
        %v537 = vsub.s32 %v534, %v536
        %v538 = vrot.slane %v524, %v537
        %v539 = vcombine.high %v531, %v531
        %vm540 = vcmask 31744
        %v542 = vsel %vm540, %v521, 0
        %v545 = vsel %vm540, %v522, 0
        %vm547 = vcmask 1041408
        %v549 = vsel %vm547, %v531, 0
        %v552 = vsel %vm547, %v539, 0
        %v555 = vsel %vm547, %v538, 0
        %557 = vmatprep.subr.bf16.mxu0 %v552
        %558 = vmatpush1.bf16.msra.mxu0 %v549
        %559 = vmatprep.subr.bf16.mxu0 0
        %560 = vmatpush1.bf16.msra.mxu0 0
        %561 = vmatprep.subr.bf16.mxu0 0
        %562 = vmatpush1.bf16.msra.mxu0 0
        %563 = vmatprep.subr.bf16.mxu0 0
        %564 = vmatpush1.bf16.msra.mxu0 0
        %565 = vmatprep.subr.bf16.mxu0 0
        %566 = vmatpush1.bf16.msra.mxu0 0
        %567 = vmatprep.subr.bf16.mxu0 0
        %568 = vmatpush1.bf16.msra.mxu0 0
        %569 = vmatprep.subr.bf16.mxu0 0
        %570 = vmatpush1.bf16.msra.mxu0 0
        %571 = vmatprep.subr.bf16.mxu0 0
        %572 = vmatpush1.bf16.msra.mxu0 0
        %573 = vmatprep.subr.bf16.mxu0 0
        %574 = vmatpush1.bf16.msra.mxu0 0
        %575 = vmatprep.subr.bf16.mxu0 0
        %576 = vmatpush1.bf16.msra.mxu0 0
        %577 = vmatprep.subr.bf16.mxu0 0
        %578 = vmatpush1.bf16.msra.mxu0 0
        %579 = vmatprep.subr.bf16.mxu0 0
        %580 = vmatpush1.bf16.msra.mxu0 0
        %581 = vmatprep.subr.bf16.mxu0 0
        %582 = vmatpush1.bf16.msra.mxu0 0
        %583 = vmatprep.subr.bf16.mxu0 0
        %584 = vmatpush1.bf16.msra.mxu0 0
        %585 = vmatprep.subr.bf16.mxu0 0
        %586 = vmatpush1.bf16.msra.mxu0 0
        %587 = vmatprep.subr.bf16.mxu0 0
        %588 = vmatpush1.bf16.msra.mxu0 0
        %589 = vmatprep.mubr.bf16.mxu0 0
        %590 = vmatmul.mubr.bf16.gmra.mrb[0].mxu0 %v542
        %v591 = vpop.f32.mrb[0].mxu0
        %v592 = vadd.f32 %v501, %v591
        %v593 = vpop.f32.mrb[0].mxu0
        %v594 = vadd.f32 %v505, %v593
        %v595 = vpop.f32.mrb[0].mxu0
        %v596 = vadd.f32 %v501, %v595
        %v597 = vpop.f32.mrb[0].mxu0
        %v598 = vadd.f32 %v505, %v597
        %599 = vmatprep.mubr.bf16.mxu0 0
        %600 = vmatmul.mubr.bf16.gmra.mrb[0].mxu0 %v545
        %v601 = vpop.f32.mrb[0].mxu0
        %v602 = vadd.f32 %v501, %v601
        %v603 = vpop.f32.mrb[0].mxu0
        %v604 = vadd.f32 %v505, %v603
        %v605 = vpop.f32.mrb[0].mxu0
        %v606 = vadd.f32 %v501, %v605
        %v607 = vpop.f32.mrb[0].mxu0
        %v608 = vadd.f32 %v505, %v607
        %609 = vdwg.mxu0
        %610 = vmatprep.subr.bf16.mxu0 0
        %611 = vmatpush1.bf16.msra.mxu0 %v555
        %612 = vmatprep.subr.bf16.mxu0 0
        %613 = vmatpush1.bf16.msra.mxu0 0
        %614 = vmatprep.subr.bf16.mxu0 0
        %615 = vmatpush1.bf16.msra.mxu0 0
        %616 = vmatprep.subr.bf16.mxu0 0
        %617 = vmatpush1.bf16.msra.mxu0 0
        %618 = vmatprep.subr.bf16.mxu0 0
        %619 = vmatpush1.bf16.msra.mxu0 0
        %620 = vmatprep.subr.bf16.mxu0 0
        %621 = vmatpush1.bf16.msra.mxu0 0
        %622 = vmatprep.subr.bf16.mxu0 0
        %623 = vmatpush1.bf16.msra.mxu0 0
        %624 = vmatprep.subr.bf16.mxu0 0
        %625 = vmatpush1.bf16.msra.mxu0 0
        %626 = vmatprep.subr.bf16.mxu0 0
        %627 = vmatpush1.bf16.msra.mxu0 0
        %628 = vmatprep.subr.bf16.mxu0 0
        %629 = vmatpush1.bf16.msra.mxu0 0
        %630 = vmatprep.subr.bf16.mxu0 0
        %631 = vmatpush1.bf16.msra.mxu0 0
        %632 = vmatprep.subr.bf16.mxu0 0
        %633 = vmatpush1.bf16.msra.mxu0 0
        %634 = vmatprep.subr.bf16.mxu0 0
        %635 = vmatpush1.bf16.msra.mxu0 0
        %636 = vmatprep.subr.bf16.mxu0 0
        %637 = vmatpush1.bf16.msra.mxu0 0
        %638 = vmatprep.subr.bf16.mxu0 0
        %639 = vmatpush1.bf16.msra.mxu0 0
        %640 = vmatprep.subr.bf16.mxu0 0
        %641 = vmatpush1.bf16.msra.mxu0 0
        %642 = vmatprep.mubr.bf16.mxu0 0
        %643 = vmatmul.mubr.bf16.gmra.mrb[0].mxu0 %v542
        %v644 = vpop.f32.mrb[0].mxu0
        %v645 = vadd.f32 %v509, %v644
        %v646 = vpop.f32.mrb[0].mxu0
        %v647 = vpop.f32.mrb[0].mxu0
        %v648 = vadd.f32 %v509, %v647
        %v649 = vpop.f32.mrb[0].mxu0
        %650 = vmatprep.mubr.bf16.mxu0 0
        %651 = vmatmul.mubr.bf16.gmra.mrb[0].mxu0 %v545
        %v652 = vpop.f32.mrb[0].mxu0
        %v653 = vadd.f32 %v509, %v652
        %v654 = vpop.f32.mrb[0].mxu0
        %v655 = vpop.f32.mrb[0].mxu0
        %v656 = vadd.f32 %v509, %v655
        %v657 = vpop.f32.mrb[0].mxu0
        %658 = vdwg.mxu0
        %v659 = vld [vmem:[%s3] sm:$0x3]
        %v660 = vld [vmem:[%s4] sm:$0xf]
        %v661 = vld [vmem:[%s4 + $0x8] sm:$0xf]
        %v662 = vld [vmem:[%s4 + $0x10] sm:$0xf]
        %v663 = vld [vmem:[%s4 + $0x18] sm:$0xf]
        %v664 = vld [vmem:[%s4 + $0x20] sm:$0xf]
        %v665 = vld [vmem:[%s4 + $0x28] sm:$0xf]
        %v666 = vld [vmem:[%s4 + $0x30] sm:$0xf]
        %v667 = vld [vmem:[%s4 + $0x38] sm:$0xf]
        %v668 = vld [vmem:[%s4 + $0x40] sm:$0xf]
        %v669 = vld [vmem:[%s4 + $0x48] sm:$0xf]
        %v670 = vld [vmem:[%s4 + $0x50] sm:$0xf]
        %v671 = vld [vmem:[%s4 + $0x58] sm:$0xf]
        %v672 = vld [vmem:[%s4 + $0x60] sm:$0xf]
        %v673 = vld [vmem:[%s4 + $0x68] sm:$0xf]
        %v674 = vld [vmem:[%s4 + $0x70] sm:$0xf]
        %v675 = vld [vmem:[%s4 + $0x78] sm:$0xf]
        %s676 = smul.u32 0, 4
        %s677 = smul.addr %s676, 4
        %s678 = scalar_lea.vmem %s430, %s677 [#allocation3]
        %v679 = vld [vmem:[%s678] sm:$0xf]
        %v680 = vld [vmem:[%s678 + $0x4] sm:$0xf]
        %v681 = vld [vmem:[%s678 + $0x8] sm:$0xf]
        %v682 = vld [vmem:[%s678 + $0xc] sm:$0xf]
        %v683 = vld [vmem:[%s678 + $0x10] sm:$0xf]
        %v684 = vld [vmem:[%s678 + $0x14] sm:$0xf]
        %v685 = vld [vmem:[%s678 + $0x18] sm:$0xf]
        %v686 = vld [vmem:[%s678 + $0x1c] sm:$0xf]
        %v687 = vld [vmem:[%s678 + $0x20] sm:$0xf]
        %v688 = vld [vmem:[%s678 + $0x24] sm:$0xf]
        %v689 = vld [vmem:[%s678 + $0x28] sm:$0xf]
        %v690 = vld [vmem:[%s678 + $0x2c] sm:$0xf]
        %v691 = vld [vmem:[%s678 + $0x30] sm:$0xf]
        %v692 = vld [vmem:[%s678 + $0x34] sm:$0xf]
        %v693 = vld [vmem:[%s678 + $0x38] sm:$0xf]
        %v694 = vld [vmem:[%s678 + $0x3c] sm:$0xf]
        %v695 = vld [vmem:[%s678 + $0x40] sm:$0xf]
        %v696 = vld [vmem:[%s678 + $0x44] sm:$0xf]
        %v697 = vld [vmem:[%s678 + $0x48] sm:$0xf]
        %v698 = vld [vmem:[%s678 + $0x4c] sm:$0xf]
        %v699 = vld [vmem:[%s678 + $0x50] sm:$0xf]
        %v700 = vld [vmem:[%s678 + $0x54] sm:$0xf]
        %v701 = vld [vmem:[%s678 + $0x58] sm:$0xf]
        %v702 = vld [vmem:[%s678 + $0x5c] sm:$0xf]
        %v703 = vld [vmem:[%s678 + $0x60] sm:$0xf]
        %v704 = vld [vmem:[%s678 + $0x64] sm:$0xf]
        %v705 = vld [vmem:[%s678 + $0x68] sm:$0xf]
        %v706 = vld [vmem:[%s678 + $0x6c] sm:$0xf]
        %v707 = vld [vmem:[%s678 + $0x70] sm:$0xf]
        %v708 = vld [vmem:[%s678 + $0x74] sm:$0xf]
        %v709 = vld [vmem:[%s678 + $0x78] sm:$0xf]
        %v710 = vld [vmem:[%s678 + $0x7c] sm:$0xf]
        %v711 = vlaneseq
        %v712 = vshrl.u32 %v711, 7
        %v713 = vsub.s32 0, %v712
        %v714 = vrot.slane %v489, %v713
        %v747 = vunpack.c.l.b16 %v679
        %v748 = vunpack.c.l.b16 %v680
        %v749 = vunpack.c.l.b16 %v681
        %v750 = vunpack.c.l.b16 %v682
        %v751 = vunpack.c.l.b16 %v683
        %v752 = vunpack.c.l.b16 %v684
        %v753 = vunpack.c.l.b16 %v685
        %v754 = vunpack.c.l.b16 %v686
        %v755 = vunpack.c.l.b16 %v687
        %v756 = vunpack.c.l.b16 %v688
        %v757 = vunpack.c.l.b16 %v689
        %v758 = vunpack.c.l.b16 %v690
        %v759 = vunpack.c.l.b16 %v691
        %v760 = vunpack.c.l.b16 %v692
        %v761 = vunpack.c.l.b16 %v693
        %v762 = vunpack.c.l.b16 %v694
        %v763 = vunpack.c.l.b16 %v695
        %v764 = vunpack.c.l.b16 %v696
        %v765 = vunpack.c.l.b16 %v697
        %v766 = vunpack.c.l.b16 %v698
        %v767 = vunpack.c.l.b16 %v699
        %v768 = vunpack.c.l.b16 %v700
        %v769 = vunpack.c.l.b16 %v701
        %v770 = vunpack.c.l.b16 %v702
        %v771 = vunpack.c.l.b16 %v703
        %v772 = vunpack.c.l.b16 %v704
        %v773 = vunpack.c.l.b16 %v705
        %v774 = vunpack.c.l.b16 %v706
        %v775 = vunpack.c.l.b16 %v707
        %v776 = vunpack.c.l.b16 %v708
        %v777 = vunpack.c.l.b16 %v709
        %v778 = vunpack.c.l.b16 %v710
        %v779 = vpack.c.b16 %v748, %v747
        %v780 = vpack.c.b16 %v750, %v749
        %v781 = vpack.c.b16 %v752, %v751
        %v782 = vpack.c.b16 %v754, %v753
        %v783 = vpack.c.b16 %v756, %v755
        %v784 = vpack.c.b16 %v758, %v757
        %v785 = vpack.c.b16 %v760, %v759
        %v786 = vpack.c.b16 %v762, %v761
        %v787 = vpack.c.b16 %v764, %v763
        %v788 = vpack.c.b16 %v766, %v765
        %v789 = vpack.c.b16 %v768, %v767
        %v790 = vpack.c.b16 %v770, %v769
        %v791 = vpack.c.b16 %v772, %v771
        %v792 = vpack.c.b16 %v774, %v773
        %v793 = vpack.c.b16 %v776, %v775
        %v794 = vpack.c.b16 %v778, %v777
        %v796 = vsel %vm540, %v779, 0
        %v799 = vsel %vm540, %v780, 0
        %v802 = vsel %vm540, %v781, 0
        %v805 = vsel %vm540, %v782, 0
        %v808 = vsel %vm540, %v783, 0
        %v811 = vsel %vm540, %v784, 0
        %v814 = vsel %vm540, %v785, 0
        %v817 = vsel %vm540, %v786, 0
        %v820 = vsel %vm540, %v787, 0
        %v823 = vsel %vm540, %v788, 0
        %v826 = vsel %vm540, %v789, 0
        %v829 = vsel %vm540, %v790, 0
        %v832 = vsel %vm540, %v791, 0
        %v835 = vsel %vm540, %v792, 0
        %v838 = vsel %vm540, %v793, 0
        %v841 = vsel %vm540, %v794, 0
        %v844 = vsel %vm547, %v659, 0
        %846 = vmatprep.subr.bf16.mxu0 0
        %847 = vmatpush1.bf16.msra.mxu0 %v844
        %848 = vmatprep.subr.bf16.mxu0 0
        %849 = vmatpush1.bf16.msra.mxu0 0
        %850 = vmatprep.subr.bf16.mxu0 0
        %851 = vmatpush1.bf16.msra.mxu0 0
        %852 = vmatprep.subr.bf16.mxu0 0
        %853 = vmatpush1.bf16.msra.mxu0 0
        %854 = vmatprep.subr.bf16.mxu0 0
        %855 = vmatpush1.bf16.msra.mxu0 0
        %856 = vmatprep.subr.bf16.mxu0 0
        %857 = vmatpush1.bf16.msra.mxu0 0
        %858 = vmatprep.subr.bf16.mxu0 0
        %859 = vmatpush1.bf16.msra.mxu0 0
        %860 = vmatprep.subr.bf16.mxu0 0
        %861 = vmatpush1.bf16.msra.mxu0 0
        %862 = vmatprep.subr.bf16.mxu0 0
        %863 = vmatpush1.bf16.msra.mxu0 0
        %864 = vmatprep.subr.bf16.mxu0 0
        %865 = vmatpush1.bf16.msra.mxu0 0
        %866 = vmatprep.subr.bf16.mxu0 0
        %867 = vmatpush1.bf16.msra.mxu0 0
        %868 = vmatprep.subr.bf16.mxu0 0
        %869 = vmatpush1.bf16.msra.mxu0 0
        %870 = vmatprep.subr.bf16.mxu0 0
        %871 = vmatpush1.bf16.msra.mxu0 0
        %872 = vmatprep.subr.bf16.mxu0 0
        %873 = vmatpush1.bf16.msra.mxu0 0
        %874 = vmatprep.subr.bf16.mxu0 0
        %875 = vmatpush1.bf16.msra.mxu0 0
        %876 = vmatprep.subr.bf16.mxu0 0
        %877 = vmatpush1.bf16.msra.mxu0 0
        %878 = vmatprep.mubr.bf16.mxu0 0
        %879 = vmatmul.mubr.bf16.gmra.mrb[0].mxu0 %v796
        %v880 = vpop.f32.mrb[0].mxu0
        %v881 = vadd.f32 %v714, %v880
        %v882 = vpop.f32.mrb[0].mxu0
        %v883 = vpop.f32.mrb[0].mxu0
        %v884 = vadd.f32 %v714, %v883
        %v885 = vpop.f32.mrb[0].mxu0
        %886 = vmatprep.mubr.bf16.mxu0 0
        %887 = vmatmul.mubr.bf16.gmra.mrb[0].mxu0 %v799
        %v888 = vpop.f32.mrb[0].mxu0
        %v889 = vadd.f32 %v714, %v888
        %v890 = vpop.f32.mrb[0].mxu0
        %v891 = vpop.f32.mrb[0].mxu0
        %v892 = vadd.f32 %v714, %v891
        %v893 = vpop.f32.mrb[0].mxu0
        %894 = vmatprep.mubr.bf16.mxu0 0
        %895 = vmatmul.mubr.bf16.gmra.mrb[0].mxu0 %v802
        %v896 = vpop.f32.mrb[0].mxu0
        %v897 = vadd.f32 %v714, %v896
        %v898 = vpop.f32.mrb[0].mxu0
        %v899 = vpop.f32.mrb[0].mxu0
        %v900 = vadd.f32 %v714, %v899
        %v901 = vpop.f32.mrb[0].mxu0
        %902 = vmatprep.mubr.bf16.mxu0 0
        %903 = vmatmul.mubr.bf16.gmra.mrb[0].mxu0 %v805
        %v904 = vpop.f32.mrb[0].mxu0
        %v905 = vadd.f32 %v714, %v904
        %v906 = vpop.f32.mrb[0].mxu0
        %v907 = vpop.f32.mrb[0].mxu0
        %v908 = vadd.f32 %v714, %v907
        %v909 = vpop.f32.mrb[0].mxu0
        %910 = vmatprep.mubr.bf16.mxu0 0
        %911 = vmatmul.mubr.bf16.gmra.mrb[0].mxu0 %v808
        %v912 = vpop.f32.mrb[0].mxu0
        %v913 = vadd.f32 %v714, %v912
        %v914 = vpop.f32.mrb[0].mxu0
        %v915 = vpop.f32.mrb[0].mxu0
        %v916 = vadd.f32 %v714, %v915
        %v917 = vpop.f32.mrb[0].mxu0
        %918 = vmatprep.mubr.bf16.mxu0 0
        %919 = vmatmul.mubr.bf16.gmra.mrb[0].mxu0 %v811
        %v920 = vpop.f32.mrb[0].mxu0
        %v921 = vadd.f32 %v714, %v920
        %v922 = vpop.f32.mrb[0].mxu0
        %v923 = vpop.f32.mrb[0].mxu0
        %v924 = vadd.f32 %v714, %v923
        %v925 = vpop.f32.mrb[0].mxu0
        %926 = vmatprep.mubr.bf16.mxu0 0
        %927 = vmatmul.mubr.bf16.gmra.mrb[0].mxu0 %v814
        %v928 = vpop.f32.mrb[0].mxu0
        %v929 = vadd.f32 %v714, %v928
        %v930 = vpop.f32.mrb[0].mxu0
        %v931 = vpop.f32.mrb[0].mxu0
        %v932 = vadd.f32 %v714, %v931
        %v933 = vpop.f32.mrb[0].mxu0
        %934 = vmatprep.mubr.bf16.mxu0 0
        %935 = vmatmul.mubr.bf16.gmra.mrb[0].mxu0 %v817
        %v936 = vpop.f32.mrb[0].mxu0
        %v937 = vadd.f32 %v714, %v936
        %v938 = vpop.f32.mrb[0].mxu0
        %v939 = vpop.f32.mrb[0].mxu0
        %v940 = vadd.f32 %v714, %v939
        %v941 = vpop.f32.mrb[0].mxu0
        %942 = vmatprep.mubr.bf16.mxu0 0
        %943 = vmatmul.mubr.bf16.gmra.mrb[0].mxu0 %v820
        %v944 = vpop.f32.mrb[0].mxu0
        %v945 = vadd.f32 %v714, %v944
        %v946 = vpop.f32.mrb[0].mxu0
        %v947 = vpop.f32.mrb[0].mxu0
        %v948 = vadd.f32 %v714, %v947
        %v949 = vpop.f32.mrb[0].mxu0
        %950 = vmatprep.mubr.bf16.mxu0 0
        %951 = vmatmul.mubr.bf16.gmra.mrb[0].mxu0 %v823
        %v952 = vpop.f32.mrb[0].mxu0
        %v953 = vadd.f32 %v714, %v952
        %v954 = vpop.f32.mrb[0].mxu0
        %v955 = vpop.f32.mrb[0].mxu0
        %v956 = vadd.f32 %v714, %v955
        %v957 = vpop.f32.mrb[0].mxu0
        %958 = vmatprep.mubr.bf16.mxu0 0
        %959 = vmatmul.mubr.bf16.gmra.mrb[0].mxu0 %v826
        %v960 = vpop.f32.mrb[0].mxu0
        %v961 = vadd.f32 %v714, %v960
        %v962 = vpop.f32.mrb[0].mxu0
        %v963 = vpop.f32.mrb[0].mxu0
        %v964 = vadd.f32 %v714, %v963
        %v965 = vpop.f32.mrb[0].mxu0
        %966 = vmatprep.mubr.bf16.mxu0 0
        %967 = vmatmul.mubr.bf16.gmra.mrb[0].mxu0 %v829
        %v968 = vpop.f32.mrb[0].mxu0
        %v969 = vadd.f32 %v714, %v968
        %v970 = vpop.f32.mrb[0].mxu0
        %v971 = vpop.f32.mrb[0].mxu0
        %v972 = vadd.f32 %v714, %v971
        %v973 = vpop.f32.mrb[0].mxu0
        %974 = vmatprep.mubr.bf16.mxu0 0
        %975 = vmatmul.mubr.bf16.gmra.mrb[0].mxu0 %v832
        %v976 = vpop.f32.mrb[0].mxu0
        %v977 = vadd.f32 %v714, %v976
        %v978 = vpop.f32.mrb[0].mxu0
        %v979 = vpop.f32.mrb[0].mxu0
        %v980 = vadd.f32 %v714, %v979
        %v981 = vpop.f32.mrb[0].mxu0
        %982 = vmatprep.mubr.bf16.mxu0 0
        %983 = vmatmul.mubr.bf16.gmra.mrb[0].mxu0 %v835
        %v984 = vpop.f32.mrb[0].mxu0
        %v985 = vadd.f32 %v714, %v984
        %v986 = vpop.f32.mrb[0].mxu0
        %v987 = vpop.f32.mrb[0].mxu0
        %v988 = vadd.f32 %v714, %v987
        %v989 = vpop.f32.mrb[0].mxu0
        %990 = vmatprep.mubr.bf16.mxu0 0
        %991 = vmatmul.mubr.bf16.gmra.mrb[0].mxu0 %v838
        %v992 = vpop.f32.mrb[0].mxu0
        %v993 = vadd.f32 %v714, %v992
        %v994 = vpop.f32.mrb[0].mxu0
        %v995 = vpop.f32.mrb[0].mxu0
        %v996 = vadd.f32 %v714, %v995
        %v997 = vpop.f32.mrb[0].mxu0
        %998 = vmatprep.mubr.bf16.mxu0 0
        %999 = vmatmul.mubr.bf16.gmra.mrb[0].mxu0 %v841
        %v1000 = vpop.f32.mrb[0].mxu0
        %v1001 = vadd.f32 %v714, %v1000
        %v1002 = vpop.f32.mrb[0].mxu0
        %v1003 = vpop.f32.mrb[0].mxu0
        %v1004 = vadd.f32 %v714, %v1003
        %v1005 = vpop.f32.mrb[0].mxu0
        %1006 = vdwg.mxu0
        %v1007 = vmax.f32 %v881, 0.0
        %v1008 = vmax.f32 %v884, 0.0
        %v1009 = vmax.f32 %v889, 0.0
        %v1010 = vmax.f32 %v892, 0.0
        %v1011 = vmax.f32 %v897, 0.0
        %v1012 = vmax.f32 %v900, 0.0
        %v1013 = vmax.f32 %v905, 0.0
        %v1014 = vmax.f32 %v908, 0.0
        %v1015 = vmax.f32 %v913, 0.0
        %v1016 = vmax.f32 %v916, 0.0
        %v1017 = vmax.f32 %v921, 0.0
        %v1018 = vmax.f32 %v924, 0.0
        %v1019 = vmax.f32 %v929, 0.0
        %v1020 = vmax.f32 %v932, 0.0
        %v1021 = vmax.f32 %v937, 0.0
        %v1022 = vmax.f32 %v940, 0.0
        %v1023 = vmax.f32 %v945, 0.0
        %v1024 = vmax.f32 %v948, 0.0
        %v1025 = vmax.f32 %v953, 0.0
        %v1026 = vmax.f32 %v956, 0.0
        %v1027 = vmax.f32 %v961, 0.0
        %v1028 = vmax.f32 %v964, 0.0
        %v1029 = vmax.f32 %v969, 0.0
        %v1030 = vmax.f32 %v972, 0.0
        %v1031 = vmax.f32 %v977, 0.0
        %v1032 = vmax.f32 %v980, 0.0
        %v1033 = vmax.f32 %v985, 0.0
        %v1034 = vmax.f32 %v988, 0.0
        %v1035 = vmax.f32 %v993, 0.0
        %v1036 = vmax.f32 %v996, 0.0
        %v1037 = vmax.f32 %v1001, 0.0
        %v1038 = vmax.f32 %v1004, 0.0
        %v1039 = vpack.c.bf16 %v1008, %v1007
        %v1040 = vpack.c.bf16 %v1010, %v1009
        %v1041 = vpack.c.bf16 %v1012, %v1011
        %v1042 = vpack.c.bf16 %v1014, %v1013
        %v1043 = vpack.c.bf16 %v1016, %v1015
        %v1044 = vpack.c.bf16 %v1018, %v1017
        %v1045 = vpack.c.bf16 %v1020, %v1019
        %v1046 = vpack.c.bf16 %v1022, %v1021
        %v1047 = vpack.c.bf16 %v1024, %v1023
        %v1048 = vpack.c.bf16 %v1026, %v1025
        %v1049 = vpack.c.bf16 %v1028, %v1027
        %v1050 = vpack.c.bf16 %v1030, %v1029
        %v1051 = vpack.c.bf16 %v1032, %v1031
        %v1052 = vpack.c.bf16 %v1034, %v1033
        %v1053 = vpack.c.bf16 %v1036, %v1035
        %v1054 = vpack.c.bf16 %v1038, %v1037
        %v1055 = vlaneseq
        %v1056 = vshrl.u32 %v1055, 7
        %v1057 = vsub.s32 0, %v1056
        %v1058 = vrot.slane %v490, %v1057
        %v1075 = vunpack.c.l.b16 %v660
        %v1076 = vunpack.c.l.b16 %v661
        %v1077 = vunpack.c.l.b16 %v662
        %v1078 = vunpack.c.l.b16 %v663
        %v1079 = vunpack.c.l.b16 %v664
        %v1080 = vunpack.c.l.b16 %v665
        %v1081 = vunpack.c.l.b16 %v666
        %v1082 = vunpack.c.l.b16 %v667
        %v1083 = vunpack.c.l.b16 %v668
        %v1084 = vunpack.c.l.b16 %v669
        %v1085 = vunpack.c.l.b16 %v670
        %v1086 = vunpack.c.l.b16 %v671
        %v1087 = vunpack.c.l.b16 %v672
        %v1088 = vunpack.c.l.b16 %v673
        %v1089 = vunpack.c.l.b16 %v674
        %v1090 = vunpack.c.l.b16 %v675
        %v1091 = vpack.c.b16 %v1076, %v1075
        %v1092 = vpack.c.b16 %v1078, %v1077
        %v1093 = vpack.c.b16 %v1080, %v1079
        %v1094 = vpack.c.b16 %v1082, %v1081
        %v1095 = vpack.c.b16 %v1084, %v1083
        %v1096 = vpack.c.b16 %v1086, %v1085
        %v1097 = vpack.c.b16 %v1088, %v1087
        %v1098 = vpack.c.b16 %v1090, %v1089
        %1107 = vmatprep.subr.bf16.mxu0 0
        %1108 = vmatpush1.bf16.msra.mxu0 %v1091
        %1109 = vmatprep.subr.bf16.mxu0 0
        %1110 = vmatpush1.bf16.msra.mxu0 %v1092
        %1111 = vmatprep.subr.bf16.mxu0 0
        %1112 = vmatpush1.bf16.msra.mxu0 %v1093
        %1113 = vmatprep.subr.bf16.mxu0 0
        %1114 = vmatpush1.bf16.msra.mxu0 %v1094
        %1115 = vmatprep.subr.bf16.mxu0 0
        %1116 = vmatpush1.bf16.msra.mxu0 %v1095
        %1117 = vmatprep.subr.bf16.mxu0 0
        %1118 = vmatpush1.bf16.msra.mxu0 %v1096
        %1119 = vmatprep.subr.bf16.mxu0 0
        %1120 = vmatpush1.bf16.msra.mxu0 %v1097
        %1121 = vmatprep.subr.bf16.mxu0 0
        %1122 = vmatpush1.bf16.msra.mxu0 %v1098
        %1123 = vmatprep.subr.bf16.mxu0 0
        %1124 = vmatpush1.bf16.msra.mxu0 0
        %1125 = vmatprep.subr.bf16.mxu0 0
        %1126 = vmatpush1.bf16.msra.mxu0 0
        %1127 = vmatprep.subr.bf16.mxu0 0
        %1128 = vmatpush1.bf16.msra.mxu0 0
        %1129 = vmatprep.subr.bf16.mxu0 0
        %1130 = vmatpush1.bf16.msra.mxu0 0
        %1131 = vmatprep.subr.bf16.mxu0 0
        %1132 = vmatpush1.bf16.msra.mxu0 0
        %1133 = vmatprep.subr.bf16.mxu0 0
        %1134 = vmatpush1.bf16.msra.mxu0 0
        %1135 = vmatprep.subr.bf16.mxu0 0
        %1136 = vmatpush1.bf16.msra.mxu0 0
        %1137 = vmatprep.subr.bf16.mxu0 0
        %1138 = vmatpush1.bf16.msra.mxu0 0
        %1139 = vmatprep.mubr.bf16.mxu0 0
        %1140 = vmatmul.mubr.bf16.gmra.mrb[0].mxu0 %v1039
        %v1141 = vpop.f32.mrb[0].mxu0
        %v1142 = vadd.f32 %v1058, %v1141
        %v1143 = vpop.f32.mrb[0].mxu0
        %v1144 = vpop.f32.mrb[0].mxu0
        %v1145 = vadd.f32 %v1058, %v1144
        %v1146 = vpop.f32.mrb[0].mxu0
        %1147 = vmatprep.mubr.bf16.mxu0 0
        %1148 = vmatmul.mubr.bf16.gmra.mrb[0].mxu0 %v1040
        %v1149 = vpop.f32.mrb[0].mxu0
        %v1150 = vadd.f32 %v1058, %v1149
        %v1151 = vpop.f32.mrb[0].mxu0
        %v1152 = vpop.f32.mrb[0].mxu0
        %v1153 = vadd.f32 %v1058, %v1152
        %v1154 = vpop.f32.mrb[0].mxu0
        %1155 = vmatprep.mubr.bf16.mxu0 0
        %1156 = vmatmul.mubr.bf16.gmra.mrb[0].mxu0 %v1041
        %v1157 = vpop.f32.mrb[0].mxu0
        %v1158 = vadd.f32 %v1058, %v1157
        %v1159 = vpop.f32.mrb[0].mxu0
        %v1160 = vpop.f32.mrb[0].mxu0
        %v1161 = vadd.f32 %v1058, %v1160
        %v1162 = vpop.f32.mrb[0].mxu0
        %1163 = vmatprep.mubr.bf16.mxu0 0
        %1164 = vmatmul.mubr.bf16.gmra.mrb[0].mxu0 %v1042
        %v1165 = vpop.f32.mrb[0].mxu0
        %v1166 = vadd.f32 %v1058, %v1165
        %v1167 = vpop.f32.mrb[0].mxu0
        %v1168 = vpop.f32.mrb[0].mxu0
        %v1169 = vadd.f32 %v1058, %v1168
        %v1170 = vpop.f32.mrb[0].mxu0
        %1171 = vmatprep.mubr.bf16.mxu0 0
        %1172 = vmatmul.mubr.bf16.gmra.mrb[0].mxu0 %v1043
        %v1173 = vpop.f32.mrb[0].mxu0
        %v1174 = vadd.f32 %v1058, %v1173
        %v1175 = vpop.f32.mrb[0].mxu0
        %v1176 = vpop.f32.mrb[0].mxu0
        %v1177 = vadd.f32 %v1058, %v1176
        %v1178 = vpop.f32.mrb[0].mxu0
        %1179 = vmatprep.mubr.bf16.mxu0 0
        %1180 = vmatmul.mubr.bf16.gmra.mrb[0].mxu0 %v1044
        %v1181 = vpop.f32.mrb[0].mxu0
        %v1182 = vadd.f32 %v1058, %v1181
        %v1183 = vpop.f32.mrb[0].mxu0
        %v1184 = vpop.f32.mrb[0].mxu0
        %v1185 = vadd.f32 %v1058, %v1184
        %v1186 = vpop.f32.mrb[0].mxu0
        %1187 = vmatprep.mubr.bf16.mxu0 0
        %1188 = vmatmul.mubr.bf16.gmra.mrb[0].mxu0 %v1045
        %v1189 = vpop.f32.mrb[0].mxu0
        %v1190 = vadd.f32 %v1058, %v1189
        %v1191 = vpop.f32.mrb[0].mxu0
        %v1192 = vpop.f32.mrb[0].mxu0
        %v1193 = vadd.f32 %v1058, %v1192
        %v1194 = vpop.f32.mrb[0].mxu0
        %1195 = vmatprep.mubr.bf16.mxu0 0
        %1196 = vmatmul.mubr.bf16.gmra.mrb[0].mxu0 %v1046
        %v1197 = vpop.f32.mrb[0].mxu0
        %v1198 = vadd.f32 %v1058, %v1197
        %v1199 = vpop.f32.mrb[0].mxu0
        %v1200 = vpop.f32.mrb[0].mxu0
        %v1201 = vadd.f32 %v1058, %v1200
        %v1202 = vpop.f32.mrb[0].mxu0
        %1203 = vmatprep.mubr.bf16.mxu0 0
        %1204 = vmatmul.mubr.bf16.gmra.mrb[0].mxu0 %v1047
        %v1205 = vpop.f32.mrb[0].mxu0
        %v1206 = vadd.f32 %v1058, %v1205
        %v1207 = vpop.f32.mrb[0].mxu0
        %v1208 = vpop.f32.mrb[0].mxu0
        %v1209 = vadd.f32 %v1058, %v1208
        %v1210 = vpop.f32.mrb[0].mxu0
        %1211 = vmatprep.mubr.bf16.mxu0 0
        %1212 = vmatmul.mubr.bf16.gmra.mrb[0].mxu0 %v1048
        %v1213 = vpop.f32.mrb[0].mxu0
        %v1214 = vadd.f32 %v1058, %v1213
        %v1215 = vpop.f32.mrb[0].mxu0
        %v1216 = vpop.f32.mrb[0].mxu0
        %v1217 = vadd.f32 %v1058, %v1216
        %v1218 = vpop.f32.mrb[0].mxu0
        %1219 = vmatprep.mubr.bf16.mxu0 0
        %1220 = vmatmul.mubr.bf16.gmra.mrb[0].mxu0 %v1049
        %v1221 = vpop.f32.mrb[0].mxu0
        %v1222 = vadd.f32 %v1058, %v1221
        %v1223 = vpop.f32.mrb[0].mxu0
        %v1224 = vpop.f32.mrb[0].mxu0
        %v1225 = vadd.f32 %v1058, %v1224
        %v1226 = vpop.f32.mrb[0].mxu0
        %1227 = vmatprep.mubr.bf16.mxu0 0
        %1228 = vmatmul.mubr.bf16.gmra.mrb[0].mxu0 %v1050
        %v1229 = vpop.f32.mrb[0].mxu0
        %v1230 = vadd.f32 %v1058, %v1229
        %v1231 = vpop.f32.mrb[0].mxu0
        %v1232 = vpop.f32.mrb[0].mxu0
        %v1233 = vadd.f32 %v1058, %v1232
        %v1234 = vpop.f32.mrb[0].mxu0
        %1235 = vmatprep.mubr.bf16.mxu0 0
        %1236 = vmatmul.mubr.bf16.gmra.mrb[0].mxu0 %v1051
        %v1237 = vpop.f32.mrb[0].mxu0
        %v1238 = vadd.f32 %v1058, %v1237
        %v1239 = vpop.f32.mrb[0].mxu0
        %v1240 = vpop.f32.mrb[0].mxu0
        %v1241 = vadd.f32 %v1058, %v1240
        %v1242 = vpop.f32.mrb[0].mxu0
        %1243 = vmatprep.mubr.bf16.mxu0 0
        %1244 = vmatmul.mubr.bf16.gmra.mrb[0].mxu0 %v1052
        %v1245 = vpop.f32.mrb[0].mxu0
        %v1246 = vadd.f32 %v1058, %v1245
        %v1247 = vpop.f32.mrb[0].mxu0
        %v1248 = vpop.f32.mrb[0].mxu0
        %v1249 = vadd.f32 %v1058, %v1248
        %v1250 = vpop.f32.mrb[0].mxu0
        %1251 = vmatprep.mubr.bf16.mxu0 0
        %1252 = vmatmul.mubr.bf16.gmra.mrb[0].mxu0 %v1053
        %v1253 = vpop.f32.mrb[0].mxu0
        %v1254 = vadd.f32 %v1058, %v1253
        %v1255 = vpop.f32.mrb[0].mxu0
        %v1256 = vpop.f32.mrb[0].mxu0
        %v1257 = vadd.f32 %v1058, %v1256
        %v1258 = vpop.f32.mrb[0].mxu0
        %1259 = vmatprep.mubr.bf16.mxu0 0
        %1260 = vmatmul.mubr.bf16.gmra.mrb[0].mxu0 %v1054
        %v1261 = vpop.f32.mrb[0].mxu0
        %v1262 = vadd.f32 %v1058, %v1261
        %v1263 = vpop.f32.mrb[0].mxu0
        %v1264 = vpop.f32.mrb[0].mxu0
        %v1265 = vadd.f32 %v1058, %v1264
        %v1266 = vpop.f32.mrb[0].mxu0
        %1267 = vdwg.mxu0
        %v1268 = vunpack.c.l.bf16 %v679
        %v1269 = vunpack.c.l.bf16 %v680
        %v1270 = vunpack.c.l.bf16 %v681
        %v1271 = vunpack.c.l.bf16 %v682
        %v1272 = vunpack.c.l.bf16 %v683
        %v1273 = vunpack.c.l.bf16 %v684
        %v1274 = vunpack.c.l.bf16 %v685
        %v1275 = vunpack.c.l.bf16 %v686
        %v1276 = vunpack.c.l.bf16 %v687
        %v1277 = vunpack.c.l.bf16 %v688
        %v1278 = vunpack.c.l.bf16 %v689
        %v1279 = vunpack.c.l.bf16 %v690
        %v1280 = vunpack.c.l.bf16 %v691
        %v1281 = vunpack.c.l.bf16 %v692
        %v1282 = vunpack.c.l.bf16 %v693
        %v1283 = vunpack.c.l.bf16 %v694
        %v1284 = vunpack.c.l.bf16 %v695
        %v1285 = vunpack.c.l.bf16 %v696
        %v1286 = vunpack.c.l.bf16 %v697
        %v1287 = vunpack.c.l.bf16 %v698
        %v1288 = vunpack.c.l.bf16 %v699
        %v1289 = vunpack.c.l.bf16 %v700
        %v1290 = vunpack.c.l.bf16 %v701
        %v1291 = vunpack.c.l.bf16 %v702
        %v1292 = vunpack.c.l.bf16 %v703
        %v1293 = vunpack.c.l.bf16 %v704
        %v1294 = vunpack.c.l.bf16 %v705
        %v1295 = vunpack.c.l.bf16 %v706
        %v1296 = vunpack.c.l.bf16 %v707
        %v1297 = vunpack.c.l.bf16 %v708
        %v1298 = vunpack.c.l.bf16 %v709
        %v1299 = vunpack.c.l.bf16 %v710
        %1301 = vset.pattern.permute.xlu0 3
        %1302 = vperm.xlu0 %1301, %v1268
        %v1303 = vpop.permute.xlu0 %1302
        %1306 = vset.pattern.permute.xlu0 3
        %1307 = vperm.xlu0 %1306, %v1269
        %v1308 = vpop.permute.xlu0 %1307
        %1311 = vset.pattern.permute.xlu0 3
        %1312 = vperm.xlu0 %1311, %v1270
        %v1313 = vpop.permute.xlu0 %1312
        %1316 = vset.pattern.permute.xlu0 3
        %1317 = vperm.xlu0 %1316, %v1271
        %v1318 = vpop.permute.xlu0 %1317
        %1321 = vset.pattern.permute.xlu0 3
        %1322 = vperm.xlu0 %1321, %v1272
        %v1323 = vpop.permute.xlu0 %1322
        %1326 = vset.pattern.permute.xlu0 3
        %1327 = vperm.xlu0 %1326, %v1273
        %v1328 = vpop.permute.xlu0 %1327
        %1331 = vset.pattern.permute.xlu0 3
        %1332 = vperm.xlu0 %1331, %v1274
        %v1333 = vpop.permute.xlu0 %1332
        %1336 = vset.pattern.permute.xlu0 3
        %1337 = vperm.xlu0 %1336, %v1275
        %v1338 = vpop.permute.xlu0 %1337
        %1341 = vset.pattern.permute.xlu0 3
        %1342 = vperm.xlu0 %1341, %v1276
        %v1343 = vpop.permute.xlu0 %1342
        %1346 = vset.pattern.permute.xlu0 3
        %1347 = vperm.xlu0 %1346, %v1277
        %v1348 = vpop.permute.xlu0 %1347
        %1351 = vset.pattern.permute.xlu0 3
        %1352 = vperm.xlu0 %1351, %v1278
        %v1353 = vpop.permute.xlu0 %1352
        %1356 = vset.pattern.permute.xlu0 3
        %1357 = vperm.xlu0 %1356, %v1279
        %v1358 = vpop.permute.xlu0 %1357
        %1361 = vset.pattern.permute.xlu0 3
        %1362 = vperm.xlu0 %1361, %v1280
        %v1363 = vpop.permute.xlu0 %1362
        %1366 = vset.pattern.permute.xlu0 3
        %1367 = vperm.xlu0 %1366, %v1281
        %v1368 = vpop.permute.xlu0 %1367
        %1371 = vset.pattern.permute.xlu0 3
        %1372 = vperm.xlu0 %1371, %v1282
        %v1373 = vpop.permute.xlu0 %1372
        %1376 = vset.pattern.permute.xlu0 3
        %1377 = vperm.xlu0 %1376, %v1283
        %v1378 = vpop.permute.xlu0 %1377
        %1381 = vset.pattern.permute.xlu0 3
        %1382 = vperm.xlu0 %1381, %v1284
        %v1383 = vpop.permute.xlu0 %1382
        %1386 = vset.pattern.permute.xlu0 3
        %1387 = vperm.xlu0 %1386, %v1285
        %v1388 = vpop.permute.xlu0 %1387
        %1391 = vset.pattern.permute.xlu0 3
        %1392 = vperm.xlu0 %1391, %v1286
        %v1393 = vpop.permute.xlu0 %1392
        %1396 = vset.pattern.permute.xlu0 3
        %1397 = vperm.xlu0 %1396, %v1287
        %v1398 = vpop.permute.xlu0 %1397
        %1401 = vset.pattern.permute.xlu0 3
        %1402 = vperm.xlu0 %1401, %v1288
        %v1403 = vpop.permute.xlu0 %1402
        %1406 = vset.pattern.permute.xlu0 3
        %1407 = vperm.xlu0 %1406, %v1289
        %v1408 = vpop.permute.xlu0 %1407
        %1411 = vset.pattern.permute.xlu0 3
        %1412 = vperm.xlu0 %1411, %v1290
        %v1413 = vpop.permute.xlu0 %1412
        %1416 = vset.pattern.permute.xlu0 3
        %1417 = vperm.xlu0 %1416, %v1291
        %v1418 = vpop.permute.xlu0 %1417
        %1421 = vset.pattern.permute.xlu0 3
        %1422 = vperm.xlu0 %1421, %v1292
        %v1423 = vpop.permute.xlu0 %1422
        %1426 = vset.pattern.permute.xlu0 3
        %1427 = vperm.xlu0 %1426, %v1293
        %v1428 = vpop.permute.xlu0 %1427
        %1431 = vset.pattern.permute.xlu0 3
        %1432 = vperm.xlu0 %1431, %v1294
        %v1433 = vpop.permute.xlu0 %1432
        %1436 = vset.pattern.permute.xlu0 3
        %1437 = vperm.xlu0 %1436, %v1295
        %v1438 = vpop.permute.xlu0 %1437
        %1441 = vset.pattern.permute.xlu0 3
        %1442 = vperm.xlu0 %1441, %v1296
        %v1443 = vpop.permute.xlu0 %1442
        %1446 = vset.pattern.permute.xlu0 3
        %1447 = vperm.xlu0 %1446, %v1297
        %v1448 = vpop.permute.xlu0 %1447
        %1451 = vset.pattern.permute.xlu0 3
        %1452 = vperm.xlu0 %1451, %v1298
        %v1453 = vpop.permute.xlu0 %1452
        %1456 = vset.pattern.permute.xlu0 3
        %1457 = vperm.xlu0 %1456, %v1299
        %v1458 = vpop.permute.xlu0 %1457
        %v1460 = vmul.f32 %v1142, %v1303
        %v1461 = vmul.f32 %v1145, %v1308
        %v1462 = vmul.f32 %v1150, %v1313
        %v1463 = vmul.f32 %v1153, %v1318
        %v1464 = vmul.f32 %v1158, %v1323
        %v1465 = vmul.f32 %v1161, %v1328
        %v1466 = vmul.f32 %v1166, %v1333
        %v1467 = vmul.f32 %v1169, %v1338
        %v1468 = vmul.f32 %v1174, %v1343
        %v1469 = vmul.f32 %v1177, %v1348
        %v1470 = vmul.f32 %v1182, %v1353
        %v1471 = vmul.f32 %v1185, %v1358
        %v1472 = vmul.f32 %v1190, %v1363
        %v1473 = vmul.f32 %v1193, %v1368
        %v1474 = vmul.f32 %v1198, %v1373
        %v1475 = vmul.f32 %v1201, %v1378
        %v1476 = vmul.f32 %v1206, %v1383
        %v1477 = vmul.f32 %v1209, %v1388
        %v1478 = vmul.f32 %v1214, %v1393
        %v1479 = vmul.f32 %v1217, %v1398
        %v1480 = vmul.f32 %v1222, %v1403
        %v1481 = vmul.f32 %v1225, %v1408
        %v1482 = vmul.f32 %v1230, %v1413
        %v1483 = vmul.f32 %v1233, %v1418
        %v1484 = vmul.f32 %v1238, %v1423
        %v1485 = vmul.f32 %v1241, %v1428
        %v1486 = vmul.f32 %v1246, %v1433
        %v1487 = vmul.f32 %v1249, %v1438
        %v1488 = vmul.f32 %v1254, %v1443
        %v1489 = vmul.f32 %v1257, %v1448
        %v1490 = vmul.f32 %v1262, %v1453
        %v1491 = vmul.f32 %v1265, %v1458
        %v1492 = vadd.f32 %v1460, %v1464
        %v1493 = vadd.f32 %v1492, %v1468
        %v1494 = vadd.f32 %v1493, %v1472
        %v1495 = vadd.f32 %v1494, %v1476
        %v1496 = vadd.f32 %v1495, %v1480
        %v1497 = vadd.f32 %v1496, %v1484
        %v1498 = vadd.f32 %v1497, %v1488
        %v1499 = vadd.f32 %v1461, %v1465
        %v1500 = vadd.f32 %v1499, %v1469
        %v1501 = vadd.f32 %v1500, %v1473
        %v1502 = vadd.f32 %v1501, %v1477
        %v1503 = vadd.f32 %v1502, %v1481
        %v1504 = vadd.f32 %v1503, %v1485
        %v1505 = vadd.f32 %v1504, %v1489
        %v1506 = vadd.f32 %v1462, %v1466
        %v1507 = vadd.f32 %v1506, %v1470
        %v1508 = vadd.f32 %v1507, %v1474
        %v1509 = vadd.f32 %v1508, %v1478
        %v1510 = vadd.f32 %v1509, %v1482
        %v1511 = vadd.f32 %v1510, %v1486
        %v1512 = vadd.f32 %v1511, %v1490
        %v1513 = vadd.f32 %v1463, %v1467
        %v1514 = vadd.f32 %v1513, %v1471
        %v1515 = vadd.f32 %v1514, %v1475
        %v1516 = vadd.f32 %v1515, %v1479
        %v1517 = vadd.f32 %v1516, %v1483
        %v1518 = vadd.f32 %v1517, %v1487
        %v1519 = vadd.f32 %v1518, %v1491
        %v1520 = vadd.f32 %v1498, 0.0
        %v1521 = vadd.f32 %v1505, 0.0
        %v1522 = vadd.f32 %v1512, 0.0
        %v1523 = vadd.f32 %v1519, 0.0
        %vm1524 = vcmask 31768
        %v1525 = vsel %vm1524, %v1268, 0.0
        %v1526 = vsel %vm1524, %v1272, 0.0
        %v1527 = vadd.f32 %v1525, %v1526
        %v1528 = vsel %vm1524, %v1276, 0.0
        %v1529 = vadd.f32 %v1527, %v1528
        %v1530 = vsel %vm1524, %v1280, 0.0
        %v1531 = vadd.f32 %v1529, %v1530
        %v1532 = vsel %vm1524, %v1284, 0.0
        %v1533 = vadd.f32 %v1531, %v1532
        %v1534 = vsel %vm1524, %v1288, 0.0
        %v1535 = vadd.f32 %v1533, %v1534
        %v1536 = vsel %vm1524, %v1292, 0.0
        %v1537 = vadd.f32 %v1535, %v1536
        %v1538 = vsel %vm1524, %v1296, 0.0
        %v1539 = vadd.f32 %v1537, %v1538
        %v1540 = vsel %vm1524, %v1269, 0.0
        %v1541 = vsel %vm1524, %v1273, 0.0
        %v1542 = vadd.f32 %v1540, %v1541
        %v1543 = vsel %vm1524, %v1277, 0.0
        %v1544 = vadd.f32 %v1542, %v1543
        %v1545 = vsel %vm1524, %v1281, 0.0
        %v1546 = vadd.f32 %v1544, %v1545
        %v1547 = vsel %vm1524, %v1285, 0.0
        %v1548 = vadd.f32 %v1546, %v1547
        %v1549 = vsel %vm1524, %v1289, 0.0
        %v1550 = vadd.f32 %v1548, %v1549
        %v1551 = vsel %vm1524, %v1293, 0.0
        %v1552 = vadd.f32 %v1550, %v1551
        %v1553 = vsel %vm1524, %v1297, 0.0
        %v1554 = vadd.f32 %v1552, %v1553
        %v1555 = vsel %vm1524, %v1270, 0.0
        %v1556 = vsel %vm1524, %v1274, 0.0
        %v1557 = vadd.f32 %v1555, %v1556
        %v1558 = vsel %vm1524, %v1278, 0.0
        %v1559 = vadd.f32 %v1557, %v1558
        %v1560 = vsel %vm1524, %v1282, 0.0
        %v1561 = vadd.f32 %v1559, %v1560
        %v1562 = vsel %vm1524, %v1286, 0.0
        %v1563 = vadd.f32 %v1561, %v1562
        %v1564 = vsel %vm1524, %v1290, 0.0
        %v1565 = vadd.f32 %v1563, %v1564
        %v1566 = vsel %vm1524, %v1294, 0.0
        %v1567 = vadd.f32 %v1565, %v1566
        %v1568 = vsel %vm1524, %v1298, 0.0
        %v1569 = vadd.f32 %v1567, %v1568
        %v1570 = vsel %vm1524, %v1271, 0.0
        %v1571 = vsel %vm1524, %v1275, 0.0
        %v1572 = vadd.f32 %v1570, %v1571
        %v1573 = vsel %vm1524, %v1279, 0.0
        %v1574 = vadd.f32 %v1572, %v1573
        %v1575 = vsel %vm1524, %v1283, 0.0
        %v1576 = vadd.f32 %v1574, %v1575
        %v1577 = vsel %vm1524, %v1287, 0.0
        %v1578 = vadd.f32 %v1576, %v1577
        %v1579 = vsel %vm1524, %v1291, 0.0
        %v1580 = vadd.f32 %v1578, %v1579
        %v1581 = vsel %vm1524, %v1295, 0.0
        %v1582 = vadd.f32 %v1580, %v1581
        %v1583 = vsel %vm1524, %v1299, 0.0
        %v1584 = vadd.f32 %v1582, %v1583
        %v1585 = vadd.f32 %v1539, 0.0
        %v1586 = vadd.f32 %v1554, 0.0
        %v1587 = vadd.f32 %v1569, 0.0
        %v1588 = vadd.f32 %v1584, 0.0
        %v1589 = vrcp.pop %v1585
        %v1590 = vrcp.pop %v1586
        %v1591 = vrcp.pop %v1587
        %v1592 = vrcp.pop %v1588
        %1594 = vset.pattern.permute.xlu0 3
        %1595 = vperm.xlu0 %1594, %v1589
        %v1596 = vpop.permute.xlu0 %1595
        %1599 = vset.pattern.permute.xlu0 3
        %1600 = vperm.xlu0 %1599, %v1590
        %v1601 = vpop.permute.xlu0 %1600
        %1604 = vset.pattern.permute.xlu0 3
        %1605 = vperm.xlu0 %1604, %v1591
        %v1606 = vpop.permute.xlu0 %1605
        %1609 = vset.pattern.permute.xlu0 3
        %1610 = vperm.xlu0 %1609, %v1592
        %v1611 = vpop.permute.xlu0 %1610
        %v1613 = vmul.f32 %v1520, %v1596
        %v1614 = vmul.f32 %v1521, %v1601
        %v1615 = vmul.f32 %v1522, %v1606
        %v1616 = vmul.f32 %v1523, %v1611
        %v1617 = vadd.f32 %v592, %v1613
        %v1618 = vadd.f32 %v596, %v1614
        %v1619 = vadd.f32 %v602, %v1615
        %v1620 = vadd.f32 %v606, %v1616
        %v1621 = vmul.f32 %v1617, 0.17677669
        %v1622 = vmul.f32 %v1618, 0.17677669
        %v1623 = vmul.f32 %v1619, 0.17677669
        %v1624 = vmul.f32 %v1620, 0.17677669
        %v1625 = vpack.c.bf16 %v1622, %v1621
        %v1626 = vpack.c.bf16 %v1624, %v1623
        %1627 = vst [vmem:[#allocation2] sm:$0xff] %v1625
        %1628 = vst [vmem:[#allocation2 + $0x8] sm:$0xff] %v1626
        %v1629 = vadd.f32 %v594, %v1613
        %v1630 = vadd.f32 %v598, %v1614
        %v1631 = vadd.f32 %v604, %v1615
        %v1632 = vadd.f32 %v608, %v1616
        %v1633 = vpack.c.bf16 %v1630, %v1629
        %v1634 = vpack.c.bf16 %v1632, %v1631
        %v1635 = vadd.f32 %v645, %v1613
        %v1636 = vadd.f32 %v648, %v1614
        %v1637 = vadd.f32 %v653, %v1615
        %v1638 = vadd.f32 %v656, %v1616
        %v1639 = vpack.c.bf16 %v1636, %v1635
        %v1640 = vpack.c.bf16 %v1638, %v1637
        %v1641 = vld [vmem:[%s4 + $0x4] sm:$0xf]
        %v1642 = vld [vmem:[%s4 + $0xc] sm:$0xf]
        %v1643 = vld [vmem:[%s4 + $0x14] sm:$0xf]
        %v1644 = vld [vmem:[%s4 + $0x1c] sm:$0xf]
        %v1645 = vld [vmem:[%s4 + $0x24] sm:$0xf]
        %v1646 = vld [vmem:[%s4 + $0x2c] sm:$0xf]
        %v1647 = vld [vmem:[%s4 + $0x34] sm:$0xf]
        %v1648 = vld [vmem:[%s4 + $0x3c] sm:$0xf]
        %v1649 = vld [vmem:[%s4 + $0x44] sm:$0xf]
        %v1650 = vld [vmem:[%s4 + $0x4c] sm:$0xf]
        %v1651 = vld [vmem:[%s4 + $0x54] sm:$0xf]
        %v1652 = vld [vmem:[%s4 + $0x5c] sm:$0xf]
        %v1653 = vld [vmem:[%s4 + $0x64] sm:$0xf]
        %v1654 = vld [vmem:[%s4 + $0x6c] sm:$0xf]
        %v1655 = vld [vmem:[%s4 + $0x74] sm:$0xf]
        %v1656 = vld [vmem:[%s4 + $0x7c] sm:$0xf]
        %v1657 = vld [vmem:[#allocation2] sm:$0xff]
        %v1658 = vld [vmem:[#allocation2 + $0x8] sm:$0xff]
        %1659 = vmatprep.subr.bf16.mxu0 0
        %1660 = vmatpush1.bf16.xpose.msra.mxu0 %v1633
        %1661 = vmatprep.subr.bf16.mxu0 0
        %1662 = vmatpush1.bf16.xpose.msra.mxu0 0
        %1663 = vmatprep.subr.bf16.mxu0 0
        %1664 = vmatpush1.bf16.xpose.msra.mxu0 0
        %1665 = vmatprep.subr.bf16.mxu0 0
        %1666 = vmatpush1.bf16.xpose.msra.mxu0 0
        %1667 = vmatprep.subr.bf16.mxu0 0
        %1668 = vmatpush1.bf16.xpose.msra.mxu0 0
        %1669 = vmatprep.subr.bf16.mxu0 0
        %1670 = vmatpush1.bf16.xpose.msra.mxu0 0
        %1671 = vmatprep.subr.bf16.mxu0 0
        %1672 = vmatpush1.bf16.xpose.msra.mxu0 0
        %1673 = vmatprep.subr.bf16.mxu0 0
        %1674 = vmatpush1.bf16.xpose.msra.mxu0 0
        %1675 = vmatprep.subr.bf16.mxu0 0
        %1676 = vmatpush1.bf16.xpose.msra.mxu0 0
        %1677 = vmatprep.subr.bf16.mxu0 0
        %1678 = vmatpush1.bf16.xpose.msra.mxu0 0
        %1679 = vmatprep.subr.bf16.mxu0 0
        %1680 = vmatpush1.bf16.xpose.msra.mxu0 0
        %1681 = vmatprep.subr.bf16.mxu0 0
        %1682 = vmatpush1.bf16.xpose.msra.mxu0 0
        %1683 = vmatprep.subr.bf16.mxu0 0
        %1684 = vmatpush1.bf16.xpose.msra.mxu0 0
        %1685 = vmatprep.subr.bf16.mxu0 0
        %1686 = vmatpush1.bf16.xpose.msra.mxu0 0
        %1687 = vmatprep.subr.bf16.mxu0 0
        %1688 = vmatpush1.bf16.xpose.msra.mxu0 0
        %1689 = vmatprep.subr.bf16.mxu0 0
        %1690 = vmatpush1.bf16.xpose.msra.mxu0 0
        %1691 = vmatprep.mubr.bf16.mxu0 0
        %1692 = vmatmul.mubr.bf16.gmra.mrb[0].mxu0 %v1657
        %v1693 = vpop.f32.mrb[0].mxu0
        %v1694 = vadd.f32 0.0, %v1693
        %v1695 = vpop.f32.mrb[0].mxu0
        %v1696 = vpop.f32.mrb[0].mxu0
        %v1697 = vadd.f32 0.0, %v1696
        %v1698 = vpop.f32.mrb[0].mxu0
        %1699 = vdwg.mxu0
        %1700 = vmatprep.subr.bf16.mxu0 0
        %1701 = vmatpush1.bf16.xpose.msra.mxu0 %v1634
        %1702 = vmatprep.subr.bf16.mxu0 0
        %1703 = vmatpush1.bf16.xpose.msra.mxu0 0
        %1704 = vmatprep.subr.bf16.mxu0 0
        %1705 = vmatpush1.bf16.xpose.msra.mxu0 0
        %1706 = vmatprep.subr.bf16.mxu0 0
        %1707 = vmatpush1.bf16.xpose.msra.mxu0 0
        %1708 = vmatprep.subr.bf16.mxu0 0
        %1709 = vmatpush1.bf16.xpose.msra.mxu0 0
        %1710 = vmatprep.subr.bf16.mxu0 0
        %1711 = vmatpush1.bf16.xpose.msra.mxu0 0
        %1712 = vmatprep.subr.bf16.mxu0 0
        %1713 = vmatpush1.bf16.xpose.msra.mxu0 0
        %1714 = vmatprep.subr.bf16.mxu0 0
        %1715 = vmatpush1.bf16.xpose.msra.mxu0 0
        %1716 = vmatprep.subr.bf16.mxu0 0
        %1717 = vmatpush1.bf16.xpose.msra.mxu0 0
        %1718 = vmatprep.subr.bf16.mxu0 0
        %1719 = vmatpush1.bf16.xpose.msra.mxu0 0
        %1720 = vmatprep.subr.bf16.mxu0 0
        %1721 = vmatpush1.bf16.xpose.msra.mxu0 0
        %1722 = vmatprep.subr.bf16.mxu0 0
        %1723 = vmatpush1.bf16.xpose.msra.mxu0 0
        %1724 = vmatprep.subr.bf16.mxu0 0
        %1725 = vmatpush1.bf16.xpose.msra.mxu0 0
        %1726 = vmatprep.subr.bf16.mxu0 0
        %1727 = vmatpush1.bf16.xpose.msra.mxu0 0
        %1728 = vmatprep.subr.bf16.mxu0 0
        %1729 = vmatpush1.bf16.xpose.msra.mxu0 0
        %1730 = vmatprep.subr.bf16.mxu0 0
        %1731 = vmatpush1.bf16.xpose.msra.mxu0 0
        %1732 = vmatprep.mubr.bf16.mxu0 0
        %1733 = vmatmul.mubr.bf16.gmra.mrb[0].mxu0 %v1658
        %v1734 = vpop.f32.mrb[0].mxu0
        %v1735 = vadd.f32 0.0, %v1734
        %v1736 = vpop.f32.mrb[0].mxu0
        %v1737 = vpop.f32.mrb[0].mxu0
        %v1738 = vadd.f32 0.0, %v1737
        %v1739 = vpop.f32.mrb[0].mxu0
        %1740 = vdwg.mxu0
        %vm1741 = vcmask 130048
        %v1742 = vsel %vm1741, %v1694, -inf
        %1743 = vmax.xlane.f32.xlu0 %v1742
        %v1744 = vpop.xlane.xlu0 %1743
        %v1745 = vsel %vm1741, %v1697, -inf
        %1746 = vmax.xlane.f32.xlu0 %v1745
        %v1747 = vpop.xlane.xlu0 %1746
        %v1748 = vsel %vm1741, %v1735, -inf
        %1749 = vmax.xlane.f32.xlu0 %v1748
        %v1750 = vpop.xlane.xlu0 %1749
        %v1751 = vsel %vm1741, %v1738, -inf
        %1752 = vmax.xlane.f32.xlu0 %v1751
        %v1753 = vpop.xlane.xlu0 %1752
        %v1754 = vsub.f32 %v1694, %v1744
        %v1755 = vsub.f32 %v1697, %v1747
        %v1756 = vsub.f32 %v1735, %v1750
        %v1757 = vsub.f32 %v1738, %v1753
        %v1758 = vmul.f32 %v1754, 1.442695
        %v1759 = vpow.pop %v1758
        %v1760 = vmul.f32 %v1755, 1.442695
        %v1761 = vpow.pop %v1760
        %v1762 = vmul.f32 %v1756, 1.442695
        %v1763 = vpow.pop %v1762
        %v1764 = vmul.f32 %v1757, 1.442695
        %v1765 = vpow.pop %v1764
        %v1766 = vsel %vm1741, %v1759, 0.0
        %1767 = vadd.xlane.f32.xlu0 %v1766
        %v1768 = vpop.xlane.xlu0 %1767
        %v1769 = vsel %vm1741, %v1761, 0.0
        %1770 = vadd.xlane.f32.xlu0 %v1769
        %v1771 = vpop.xlane.xlu0 %1770
        %v1772 = vsel %vm1741, %v1763, 0.0
        %1773 = vadd.xlane.f32.xlu0 %v1772
        %v1774 = vpop.xlane.xlu0 %1773
        %v1775 = vsel %vm1741, %v1765, 0.0
        %1776 = vadd.xlane.f32.xlu0 %v1775
        %v1777 = vpop.xlane.xlu0 %1776
        %v1778 = vrcp.pop %v1768
        %v1779 = vrcp.pop %v1771
        %v1780 = vrcp.pop %v1774
        %v1781 = vrcp.pop %v1777
        %v1782 = vmul.f32 %v1759, %v1778
        %v1783 = vmul.f32 %v1761, %v1779
        %v1784 = vmul.f32 %v1763, %v1780
        %v1785 = vmul.f32 %v1765, %v1781
        %v1786 = vpack.c.bf16 %v1783, %v1782
        %v1787 = vpack.c.bf16 %v1785, %v1784
        %v1789 = vsel %vm1741, %v1786, 0
        %1791 = vmatprep.subr.bf16.mxu0 0
        %1792 = vmatpush1.bf16.msra.mxu0 %v1639
        %1793 = vmatprep.subr.bf16.mxu0 0
        %1794 = vmatpush1.bf16.msra.mxu0 0
        %1795 = vmatprep.subr.bf16.mxu0 0
        %1796 = vmatpush1.bf16.msra.mxu0 0
        %1797 = vmatprep.subr.bf16.mxu0 0
        %1798 = vmatpush1.bf16.msra.mxu0 0
        %1799 = vmatprep.subr.bf16.mxu0 0
        %1800 = vmatpush1.bf16.msra.mxu0 0
        %1801 = vmatprep.subr.bf16.mxu0 0
        %1802 = vmatpush1.bf16.msra.mxu0 0
        %1803 = vmatprep.subr.bf16.mxu0 0
        %1804 = vmatpush1.bf16.msra.mxu0 0
        %1805 = vmatprep.subr.bf16.mxu0 0
        %1806 = vmatpush1.bf16.msra.mxu0 0
        %1807 = vmatprep.subr.bf16.mxu0 0
        %1808 = vmatpush1.bf16.msra.mxu0 0
        %1809 = vmatprep.subr.bf16.mxu0 0
        %1810 = vmatpush1.bf16.msra.mxu0 0
        %1811 = vmatprep.subr.bf16.mxu0 0
        %1812 = vmatpush1.bf16.msra.mxu0 0
        %1813 = vmatprep.subr.bf16.mxu0 0
        %1814 = vmatpush1.bf16.msra.mxu0 0
        %1815 = vmatprep.subr.bf16.mxu0 0
        %1816 = vmatpush1.bf16.msra.mxu0 0
        %1817 = vmatprep.subr.bf16.mxu0 0
        %1818 = vmatpush1.bf16.msra.mxu0 0
        %1819 = vmatprep.subr.bf16.mxu0 0
        %1820 = vmatpush1.bf16.msra.mxu0 0
        %1821 = vmatprep.subr.bf16.mxu0 0
        %1822 = vmatpush1.bf16.msra.mxu0 0
        %1823 = vmatprep.mubr.bf16.mxu0 0
        %1824 = vmatmul.mubr.bf16.gmra.mrb[0].mxu0 %v1789
        %v1825 = vpop.f32.mrb[0].mxu0
        %v1826 = vadd.f32 0.0, %v1825
        %v1827 = vpop.f32.mrb[0].mxu0
        %v1828 = vpop.f32.mrb[0].mxu0
        %v1829 = vadd.f32 0.0, %v1828
        %v1830 = vpop.f32.mrb[0].mxu0
        %1831 = vdwg.mxu0
        %v1833 = vsel %vm1741, %v1787, 0
        %1835 = vmatprep.subr.bf16.mxu0 0
        %1836 = vmatpush1.bf16.msra.mxu0 %v1640
        %1837 = vmatprep.subr.bf16.mxu0 0
        %1838 = vmatpush1.bf16.msra.mxu0 0
        %1839 = vmatprep.subr.bf16.mxu0 0
        %1840 = vmatpush1.bf16.msra.mxu0 0
        %1841 = vmatprep.subr.bf16.mxu0 0
        %1842 = vmatpush1.bf16.msra.mxu0 0
        %1843 = vmatprep.subr.bf16.mxu0 0
        %1844 = vmatpush1.bf16.msra.mxu0 0
        %1845 = vmatprep.subr.bf16.mxu0 0
        %1846 = vmatpush1.bf16.msra.mxu0 0
        %1847 = vmatprep.subr.bf16.mxu0 0
        %1848 = vmatpush1.bf16.msra.mxu0 0
        %1849 = vmatprep.subr.bf16.mxu0 0
        %1850 = vmatpush1.bf16.msra.mxu0 0
        %1851 = vmatprep.subr.bf16.mxu0 0
        %1852 = vmatpush1.bf16.msra.mxu0 0
        %1853 = vmatprep.subr.bf16.mxu0 0
        %1854 = vmatpush1.bf16.msra.mxu0 0
        %1855 = vmatprep.subr.bf16.mxu0 0
        %1856 = vmatpush1.bf16.msra.mxu0 0
        %1857 = vmatprep.subr.bf16.mxu0 0
        %1858 = vmatpush1.bf16.msra.mxu0 0
        %1859 = vmatprep.subr.bf16.mxu0 0
        %1860 = vmatpush1.bf16.msra.mxu0 0
        %1861 = vmatprep.subr.bf16.mxu0 0
        %1862 = vmatpush1.bf16.msra.mxu0 0
        %1863 = vmatprep.subr.bf16.mxu0 0
        %1864 = vmatpush1.bf16.msra.mxu0 0
        %1865 = vmatprep.subr.bf16.mxu0 0
        %1866 = vmatpush1.bf16.msra.mxu0 0
        %1867 = vmatprep.mubr.bf16.mxu0 0
        %1868 = vmatmul.mubr.bf16.gmra.mrb[0].mxu0 %v1833
        %v1869 = vpop.f32.mrb[0].mxu0
        %v1870 = vadd.f32 0.0, %v1869
        %v1871 = vpop.f32.mrb[0].mxu0
        %v1872 = vpop.f32.mrb[0].mxu0
        %v1873 = vadd.f32 0.0, %v1872
        %v1874 = vpop.f32.mrb[0].mxu0
        %1875 = vdwg.mxu0
        %vm1876 = vcmask 261120
        %1877 = vst.msk [vmem:[%s470] sm:$0xff] %vm1876, %v1826
        %1878 = vst.msk [vmem:[%s470 + $0x8] sm:$0xff] %vm1876, %v1829
        %1879 = vst.msk [vmem:[%s470 + $0x10] sm:$0xff] %vm1876, %v1870
        %1880 = vst.msk [vmem:[%s470 + $0x18] sm:$0xff] %vm1876, %v1873
        %v1881 = vld [vmem:[%s476] sm:$0xf]
        %v1882 = vld [vmem:[%s476 + $0x4] sm:$0xf]
        %v1883 = vld [vmem:[%s476 + $0x8] sm:$0xf]
        %v1884 = vld [vmem:[%s476 + $0xc] sm:$0xf]
        %v1885 = vunpack.c.l.bf16 %v1881
        %v1886 = vunpack.c.l.bf16 %v1882
        %v1887 = vunpack.c.l.bf16 %v1883
        %v1888 = vunpack.c.l.bf16 %v1884
        %v1889 = vpack.c.bf16 %v1829, %v1826
        %v1890 = vpack.c.bf16 %v1873, %v1870
        %v1891 = vlaneseq
        %v1892 = vshrl.u32 %v1891, 7
        %v1893 = vsub.s32 0, %v1892
        %v1894 = vrot.slane %v491, %v1893
        %v1911 = vunpack.c.l.b16 %v1641
        %v1912 = vunpack.c.l.b16 %v1642
        %v1913 = vunpack.c.l.b16 %v1643
        %v1914 = vunpack.c.l.b16 %v1644
        %v1915 = vunpack.c.l.b16 %v1645
        %v1916 = vunpack.c.l.b16 %v1646
        %v1917 = vunpack.c.l.b16 %v1647
        %v1918 = vunpack.c.l.b16 %v1648
        %v1919 = vunpack.c.l.b16 %v1649
        %v1920 = vunpack.c.l.b16 %v1650
        %v1921 = vunpack.c.l.b16 %v1651
        %v1922 = vunpack.c.l.b16 %v1652
        %v1923 = vunpack.c.l.b16 %v1653
        %v1924 = vunpack.c.l.b16 %v1654
        %v1925 = vunpack.c.l.b16 %v1655
        %v1926 = vunpack.c.l.b16 %v1656
        %v1927 = vpack.c.b16 %v1912, %v1911
        %v1928 = vpack.c.b16 %v1914, %v1913
        %v1929 = vpack.c.b16 %v1916, %v1915
        %v1930 = vpack.c.b16 %v1918, %v1917
        %v1931 = vpack.c.b16 %v1920, %v1919
        %v1932 = vpack.c.b16 %v1922, %v1921
        %v1933 = vpack.c.b16 %v1924, %v1923
        %v1934 = vpack.c.b16 %v1926, %v1925
        %1943 = vmatprep.subr.bf16.mxu0 0
        %1944 = vmatpush1.bf16.msra.mxu0 %v1927
        %1945 = vmatprep.subr.bf16.mxu0 0
        %1946 = vmatpush1.bf16.msra.mxu0 %v1928
        %1947 = vmatprep.subr.bf16.mxu0 0
        %1948 = vmatpush1.bf16.msra.mxu0 %v1929
        %1949 = vmatprep.subr.bf16.mxu0 0
        %1950 = vmatpush1.bf16.msra.mxu0 %v1930
        %1951 = vmatprep.subr.bf16.mxu0 0
        %1952 = vmatpush1.bf16.msra.mxu0 %v1931
        %1953 = vmatprep.subr.bf16.mxu0 0
        %1954 = vmatpush1.bf16.msra.mxu0 %v1932
        %1955 = vmatprep.subr.bf16.mxu0 0
        %1956 = vmatpush1.bf16.msra.mxu0 %v1933
        %1957 = vmatprep.subr.bf16.mxu0 0
        %1958 = vmatpush1.bf16.msra.mxu0 %v1934
        %1959 = vmatprep.subr.bf16.mxu0 0
        %1960 = vmatpush1.bf16.msra.mxu0 0
        %1961 = vmatprep.subr.bf16.mxu0 0
        %1962 = vmatpush1.bf16.msra.mxu0 0
        %1963 = vmatprep.subr.bf16.mxu0 0
        %1964 = vmatpush1.bf16.msra.mxu0 0
        %1965 = vmatprep.subr.bf16.mxu0 0
        %1966 = vmatpush1.bf16.msra.mxu0 0
        %1967 = vmatprep.subr.bf16.mxu0 0
        %1968 = vmatpush1.bf16.msra.mxu0 0
        %1969 = vmatprep.subr.bf16.mxu0 0
        %1970 = vmatpush1.bf16.msra.mxu0 0
        %1971 = vmatprep.subr.bf16.mxu0 0
        %1972 = vmatpush1.bf16.msra.mxu0 0
        %1973 = vmatprep.subr.bf16.mxu0 0
        %1974 = vmatpush1.bf16.msra.mxu0 0
        %1975 = vmatprep.mubr.bf16.mxu0 0
        %1976 = vmatmul.mubr.bf16.gmra.mrb[0].mxu0 %v1889
        %v1977 = vpop.f32.mrb[0].mxu0
        %v1978 = vadd.f32 %v1894, %v1977
        %v1979 = vpop.f32.mrb[0].mxu0
        %v1980 = vpop.f32.mrb[0].mxu0
        %v1981 = vadd.f32 %v1894, %v1980
        %v1982 = vpop.f32.mrb[0].mxu0
        %1983 = vmatprep.mubr.bf16.mxu0 0
        %1984 = vmatmul.mubr.bf16.gmra.mrb[0].mxu0 %v1890
        %v1985 = vpop.f32.mrb[0].mxu0
        %v1986 = vadd.f32 %v1894, %v1985
        %v1987 = vpop.f32.mrb[0].mxu0
        %v1988 = vpop.f32.mrb[0].mxu0
        %v1989 = vadd.f32 %v1894, %v1988
        %v1990 = vpop.f32.mrb[0].mxu0
        %1991 = vdwg.mxu0
        %v1992 = vadd.f32 %v1978, %v1885
        %v1993 = vadd.f32 %v1981, %v1886
        %v1994 = vadd.f32 %v1986, %v1887
        %v1995 = vadd.f32 %v1989, %v1888
        %1996 = vst.msk [vmem:[%s484] sm:$0xff] %vm540, %v1992
        %1997 = vst.msk [vmem:[%s484 + $0x8] sm:$0xff] %vm540, %v1993
        %1998 = vst.msk [vmem:[%s484 + $0x10] sm:$0xff] %vm540, %v1994
        %1999 = vst.msk [vmem:[%s484 + $0x18] sm:$0xff] %vm540, %v1995
        %s2000 = smul.u32 2, %s22
        %p2001 = scmp.lt.s32.totalorder %s2000, 3
        %s2002 = scalar_select %p2001, %s2000, 3
        %s2003 = smul.addr %s2002, 2
        %s2004 = smul.addr %s2003, 8
        %s2005 = scalar_lea.vmem %s6, %s2004
        %s2006 = sand.u32 %s192, 1
        %s2007 = scalar_lea.sflag [#allocation5], %s2006
        %s2008 = sand.u32 %s192, 1
        %s2009 = smul.addr %s2008, 32
        %s2010 = scalar_lea.vmem [#allocation4], %s2009
        // Predicated region
        $region86: #{tpu_custom_call.1} parent=80 // pred_check
          %p2011 = pneg %p176
        $region87: #{tpu_custom_call.1} parent=80 // pred_check_branch
          %2013 = sbr.rel (%p2011) target = $region89
        $region88: #{tpu_custom_call.1} parent=80 // pred_region
          %s2014 = smul.u32 2, %s22
        $region89: #{tpu_custom_call.1} parent=80 // pred_fallthru
          _
        // Predicated region
        $region90: #{tpu_custom_call.1} parent=80 // pred_check
          %p2015 = pneg %p202
        $region91: #{tpu_custom_call.1} parent=80 // pred_check_branch
          %2017 = sbr.rel (%p2015) target = $region93
        $region92: #{tpu_custom_call.1} parent=80 // pred_region
          %s2018 = smul.u32 2, %s22
          %s2020 = ssub.s32 512, 512
          %2021 = vsyncadd %s2007, %s2020
          %s2022 = smul.addr %s2018, 2
          %s2023 = smul.addr %s2022, 128
          %s2024 = scalar_lea.hbm %s7, %s2023
          %s2025 = sshll.u32 %s2010, 4
          %s2026 = int_to_ptr.vmem [resolvable:$true] %s2025
          %2031 = dma.vmem_to_hbm [thread:$0]  %s2026, 512, %s2024, %s2007, 128, 128, 8
        $region93: #{tpu_custom_call.1} parent=80 // pred_fallthru
          _
      $region81: #{tpu_custom_call.1} parent=5 // pred_fallthru
        _
      %p2032 = scmp.le.s32.totalorder 2, %s17
      // Predicated region
      $region94: #{tpu_custom_call.1} parent=5 // pred_check
        %p2033 = pneg %p2032
      $region95: #{tpu_custom_call.1} parent=5 // pred_check_branch
        %2035 = sbr.rel (%p2033) target = $region97
      $region96: #{tpu_custom_call.1} parent=5 // pred_region
        %s2036 = ssub.s32 %s17, 2
        // Predicated region
        $region98: #{tpu_custom_call.1} parent=96 // pred_check
          %p2037 = pneg %p182
        $region99: #{tpu_custom_call.1} parent=96 // pred_check_branch
          %2039 = sbr.rel (%p2037) target = $region101
        $region100: #{tpu_custom_call.1} parent=96 // pred_region
          %s2040 = smul.u32 2, %s23
          %p2041 = scmp.lt.s32.totalorder %s2040, 3
          %s2042 = scalar_select %p2041, %s2040, 3
          %s2043 = smul.addr %s2042, 2
          %s2044 = smul.addr %s2043, 8
          %s2045 = scalar_lea.vmem %s6, %s2044
        $region101: #{tpu_custom_call.1} parent=96 // pred_fallthru
          _
        // Predicated region
        $region102: #{tpu_custom_call.1} parent=96 // pred_check
          %p2046 = pneg %p208
        $region103: #{tpu_custom_call.1} parent=96 // pred_check_branch
          %2048 = sbr.rel (%p2046) target = $region105
        $region104: #{tpu_custom_call.1} parent=96 // pred_region
          %s2049 = sand.u32 %s193, 1
          %s2050 = scalar_lea.sflag [#allocation5], %s2049
          %s2051 = sand.u32 %s193, 1
          %s2052 = smul.addr %s2051, 32
          %s2053 = scalar_lea.vmem [#allocation4], %s2052
          %2054 = dma.done %s2050, 512
        $region105: #{tpu_custom_call.1} parent=96 // pred_fallthru
          _
      $region97: #{tpu_custom_call.1} parent=5 // pred_fallthru
        _
    $region6: #{tpu_custom_call.1} parent=1 // loop_footer
      %s21 = sadd.s32 1, %s17
    $region7: #{tpu_custom_call.1} parent=1 // loop_footer_branch
      %16 = sbr.rel target = $region3
    $region8: #{tpu_custom_call.1} parent=1 // loop_exit
      _
    %2055 = vsyncpa [#allocation5], 1
    %s2056 = scalar_lea.sflag [#allocation5], 1
    %2057 = vsyncpa %s2056, 1

</llo_original>
